<compile_context>
chip_gen: v7x
topology: tpu7x:2x2x1
jax: 0.10.0
libtpu: 0.0.40
codegen_flags: <defaults>
</compile_context>

<pallas_src>
import jax
import jax.numpy as jnp
from jax import lax
from jax.experimental import pallas as pl
from jax.experimental.pallas import tpu as pltpu


def _make_clstm_kernel(c_in, c_hid, H, W, bn):
    cin_tot = c_in + c_hid
    c4 = 4 * c_hid
    Wp = W + 2          # padded row width
    L = H * Wp          # flat output length (includes 2 junk cols per row)

    def kernel(xh_ref, c_ref, w_ref, b_ref, h2_ref, c2_ref):
        # xh_ref: (bn, cin_tot, (H+3)*Wp) bf16  zero-padded flat frames (x|h)
        # c_ref : (bn, c_hid, L)          f32   previous cell state (W padded)
        # w_ref : (9*c4, cin_tot)         bf16  tap-major rows, t = dy*3+dx
        # b_ref : (c4, 1)                 f32
        # h2_ref, c2_ref: (bn, c_hid, L)  f32
        bias = b_ref[...]                                       # (c4, 1)
        # Hoist the 9 per-tap weight tiles once (c4 = 32 rows -> bf16
        # tile-aligned sublane slices).
        w_taps = [w_ref[t * c4:(t + 1) * c4, :] for t in range(9)]

        for nb in range(bn):                                    # static unroll
            # Direct tap accumulation: tap (dy, dx) of the 3x3 conv is a
            # contiguous lane slice of the flat padded frame at static offset
            # dy*Wp + dx.  9 narrow-K MXU matmuls, f32 accumulator.
            acc = None
            for dy in range(3):
                for dx in range(3):
                    t = dy * 3 + dx
                    off = dy * Wp + dx
                    xs = xh_ref[nb, :, off:off + L]             # (cin_tot, L)
                    p = jnp.dot(w_taps[t], xs,
                                preferred_element_type=jnp.float32)
                    acc = p if acc is None else acc + p
            acc = acc + bias                                    # lane-broadcast

            # Gates: full-lane-width sublane slices; order matches
            # torch.chunk(4, dim=1): i, f, o, g.
            s = jax.nn.sigmoid(acc[:3 * c_hid, :])
            g = jnp.tanh(acc[3 * c_hid:, :])
            i = s[:c_hid, :]
            f = s[c_hid:2 * c_hid, :]
            o = s[2 * c_hid:, :]

            c_prev = c_ref[nb]                                  # (c_hid, L) f32
            c2 = f * c_prev + i * g
            h2 = o * jnp.tanh(c2)
            h2_ref[nb] = h2                                     # lane-dense stores
            c2_ref[nb] = c2

    return kernel


def clstm_cell(x, h, c, weight, bias, *, batch_block=None):
    """ConvLSTM cell forward, matching the PyTorch CLSTMCell.

    x: (N, c_in, H, W); h, c: (N, c_hid, H, W)     -- NCHW, like PyTorch
    weight: (4*c_hid, c_in + c_hid, 3, 3)          -- nn.Conv2d OIHW layout
    bias:   (4*c_hid,)
    Returns (h2, c2), both (N, c_hid, H, W) float32.
    """
    N, c_in, H, W = x.shape
    c_hid = h.shape[1]
    cin_tot = c_in + c_hid
    c4 = 4 * c_hid
    Wp = W + 2
    L = H * Wp
    flat_in = (H + 3) * Wp   # 1 top + 2 bottom halo rows keep all tap slices in-bounds

    if batch_block is None:
        # Default: at most 2 grid steps, each processing ceil(N/2) frames.
        # -> both v7x TensorCores get work ("parallel" axis of width 2), and
        #    per-step pipeline overhead amortizes over N/2 frames on v5e/v6e.
        batch_block = max(1, -(-N // 2))
    bn = min(batch_block, N)
    n_steps = -(-N // bn)
    Npad = n_steps * bn

    # --- wrapper-side layout plumbing (fuses into cheap XLA copies) ---------
    # Concatenate x|h on channels once, zero-pad, flatten spatial onto lanes,
    # cast MXU operands to bf16.
    xh = jnp.concatenate([x, h], axis=1)                    # (N, cin_tot, H, W)
    xh = jnp.pad(xh, ((0, Npad - N), (0, 0), (1, 2), (1, 1))
                 ).reshape(Npad, cin_tot, flat_in).astype(jnp.bfloat16)
    # Cell state stays f32; pad W by 2 to align with the flat output grid.
    cf = jnp.pad(c, ((0, Npad - N), (0, 0), (0, 0), (0, 2))
                 ).reshape(Npad, c_hid, L).astype(jnp.float32)
    # OIHW -> (kH, kW, O, I) -> (9*O, I): tap-major rows so each tap's weight
    # is a tile-aligned (c4-row) sublane slice inside the kernel.
    wt = jnp.transpose(weight, (2, 3, 0, 1)).reshape(9 * c4, cin_tot
                                                     ).astype(jnp.bfloat16)
    b2 = bias.reshape(c4, 1).astype(jnp.float32)

    kernel = _make_clstm_kernel(c_in, c_hid, H, W, bn)

    grid_spec = pltpu.PrefetchScalarGridSpec(
        num_scalar_prefetch=0,
        grid=(n_steps,),
        in_specs=[
            pl.BlockSpec((bn, cin_tot, flat_in), lambda n: (n, 0, 0)),
            pl.BlockSpec((bn, c_hid, L), lambda n: (n, 0, 0)),
            # weight / bias are grid-invariant and tiny here; at production
            # channel counts single-buffer them (pl.Buffered(1)) or stage them
            # once in VMEM scratch.
            pl.BlockSpec((9 * c4, cin_tot), lambda n: (0, 0)),
            pl.BlockSpec((c4, 1), lambda n: (0, 0)),
        ],
        out_specs=[
            pl.BlockSpec((bn, c_hid, L), lambda n: (n, 0, 0)),
            pl.BlockSpec((bn, c_hid, L), lambda n: (n, 0, 0)),
        ],
    )

    h2f, c2f = pl.pallas_call(
        kernel,
        out_shape=(
            jax.ShapeDtypeStruct((Npad, c_hid, L), jnp.float32),
            jax.ShapeDtypeStruct((Npad, c_hid, L), jnp.float32),
        ),
        grid_spec=grid_spec,
        compiler_params=pltpu.CompilerParams(
            dimension_semantics=("parallel",),
            vmem_limit_bytes=32 * 1024 * 1024),
    )(xh, cf, wt, b2)

    # Drop batch padding + the 2 junk columns per row; restore (N, c_hid, H, W).
    h2 = h2f.reshape(Npad, c_hid, H, Wp)[:N, :, :, :W]
    c2 = c2f.reshape(Npad, c_hid, H, Wp)[:N, :, :, :W]
    return h2, c2


def _reference(x, h, c, weight, bias, operand_dtype=jnp.float32):
    """Pure-JAX NCHW reference mirroring the PyTorch forward.
    operand_dtype lets us match the kernel's bf16 MXU operands exactly."""
    xh = jnp.concatenate([x, h], axis=1).astype(operand_dtype)
    g = lax.conv_general_dilated(
        xh, weight.astype(operand_dtype), window_strides=(1, 1),
        padding=((1, 1), (1, 1)),
        dimension_numbers=("NCHW", "OIHW", "NCHW"),
        preferred_element_type=jnp.float32)
    g = g + bias.reshape(1, -1, 1, 1).astype(jnp.float32)
    i, f, o, gg = jnp.split(g, 4, axis=1)
    i, f, o = jax.nn.sigmoid(i), jax.nn.sigmoid(f), jax.nn.sigmoid(o)
    gg = jnp.tanh(gg)
    c2 = f * c + i * gg
    h2 = o * jnp.tanh(c2)
    return h2, c2


if __name__ == "__main__":
    # Small shapes consistent with the module: batch=2, c_in=4, c_hid=8, 16x16.
    N, H, W = 2, 16, 16
    c_in, c_hid = 4, 8
    cin_tot, c4 = c_in + c_hid, 4 * c_hid

    key = jax.random.PRNGKey(0)
    kx, kh, kc, kw, kb = jax.random.split(key, 5)
    x = jax.random.normal(kx, (N, c_in, H, W), jnp.float32)
    h = jax.random.normal(kh, (N, c_hid, H, W), jnp.float32)
    c = jax.random.normal(kc, (N, c_hid, H, W), jnp.float32)
    # Deterministic synthetic params, same shapes as nn.Conv2d (OIHW).
    weight = 0.1 * jax.random.normal(kw, (c4, cin_tot, 3, 3), jnp.float32)
    bias = 0.1 * jax.random.normal(kb, (c4,), jnp.float32)

    h2, c2 = jax.jit(clstm_cell)(x, h, c, weight, bias)
    jax.block_until_ready((h2, c2))

    # Tight check vs. a reference that uses the same bf16 MXU operands.
    h2_bf, c2_bf = _reference(x, h, c, weight, bias, operand_dtype=jnp.bfloat16)
    assert jnp.allclose(h2, h2_bf, atol=1e-3, rtol=1e-3)
    assert jnp.allclose(c2, c2_bf, atol=1e-3, rtol=1e-3)
    # Loose check vs. the full-f32 reference (bf16 MXU operands are the only diff).
    h2_f32, c2_f32 = _reference(x, h, c, weight, bias, operand_dtype=jnp.float32)
    assert jnp.allclose(h2, h2_f32, atol=5e-2, rtol=5e-2)
    assert jnp.allclose(c2, c2_f32, atol=5e-2, rtol=5e-2)

    print("KERNEL_OK")
</pallas_src>

<mosaic_0001>
module attributes {stable_mosaic.version = 11 : i64} {
  func.func @kernel(%arg0: i32, %arg1: memref<1x12x342xbf16, #tpu.memory_space<vmem>>, %arg2: memref<1x8x288xf32, #tpu.memory_space<vmem>>, %arg3: memref<288x12xbf16, #tpu.memory_space<vmem>>, %arg4: memref<32x1xf32, #tpu.memory_space<vmem>>, %arg5: memref<1x8x288xf32, #tpu.memory_space<vmem>>, %arg6: memref<1x8x288xf32, #tpu.memory_space<vmem>>) attributes {dimension_semantics = [#tpu.dimension_semantics<parallel>], iteration_bounds = array<i64: 2>, scalar_prefetch = 0 : i64, scratch_operands = 0 : i64, tpu.core_type = #tpu.core_type<tc>, window_params = [{transform_indices = @transform_0, window_bounds = array<i64: 1, 12, 342>}, {transform_indices = @transform_1, window_bounds = array<i64: 1, 8, 288>}, {pipeline_mode = #tpu.pipeline_mode<synchronous>, transform_indices = @transform_2, window_bounds = array<i64: 288, 12>}, {pipeline_mode = #tpu.pipeline_mode<synchronous>, transform_indices = @transform_3, window_bounds = array<i64: 32, 1>}, {transform_indices = @transform_4, window_bounds = array<i64: 1, 8, 288>}, {transform_indices = @transform_5, window_bounds = array<i64: 1, 8, 288>}]} {
    %c0 = arith.constant 0 : index
    %c0_0 = arith.constant 0 : index
    %0 = vector.load %arg4[%c0, %c0_0] : memref<32x1xf32, #tpu.memory_space<vmem>>, vector<32x1xf32>
    %c0_1 = arith.constant 0 : index
    %c0_2 = arith.constant 0 : index
    %1 = vector.load %arg3[%c0_1, %c0_2] : memref<288x12xbf16, #tpu.memory_space<vmem>>, vector<32x12xbf16>
    %c32 = arith.constant 32 : index
    %c0_3 = arith.constant 0 : index
    %2 = vector.load %arg3[%c32, %c0_3] : memref<288x12xbf16, #tpu.memory_space<vmem>>, vector<32x12xbf16>
    %c64 = arith.constant 64 : index
    %c0_4 = arith.constant 0 : index
    %3 = vector.load %arg3[%c64, %c0_4] : memref<288x12xbf16, #tpu.memory_space<vmem>>, vector<32x12xbf16>
    %c96 = arith.constant 96 : index
    %c0_5 = arith.constant 0 : index
    %4 = vector.load %arg3[%c96, %c0_5] : memref<288x12xbf16, #tpu.memory_space<vmem>>, vector<32x12xbf16>
    %c128 = arith.constant 128 : index
    %c0_6 = arith.constant 0 : index
    %5 = vector.load %arg3[%c128, %c0_6] : memref<288x12xbf16, #tpu.memory_space<vmem>>, vector<32x12xbf16>
    %c160 = arith.constant 160 : index
    %c0_7 = arith.constant 0 : index
    %6 = vector.load %arg3[%c160, %c0_7] : memref<288x12xbf16, #tpu.memory_space<vmem>>, vector<32x12xbf16>
    %c192 = arith.constant 192 : index
    %c0_8 = arith.constant 0 : index
    %7 = vector.load %arg3[%c192, %c0_8] : memref<288x12xbf16, #tpu.memory_space<vmem>>, vector<32x12xbf16>
    %c224 = arith.constant 224 : index
    %c0_9 = arith.constant 0 : index
    %8 = vector.load %arg3[%c224, %c0_9] : memref<288x12xbf16, #tpu.memory_space<vmem>>, vector<32x12xbf16>
    %c256 = arith.constant 256 : index
    %c0_10 = arith.constant 0 : index
    %9 = vector.load %arg3[%c256, %c0_10] : memref<288x12xbf16, #tpu.memory_space<vmem>>, vector<32x12xbf16>
    %c0_11 = arith.constant 0 : index
    %c0_12 = arith.constant 0 : index
    %c0_13 = arith.constant 0 : index
    %10 = vector.load %arg1[%c0_11, %c0_12, %c0_13] : memref<1x12x342xbf16, #tpu.memory_space<vmem>>, vector<1x12x288xbf16>
    %11 = vector.shape_cast %10 : vector<1x12x288xbf16> to vector<12x288xbf16>
    %cst = arith.constant dense<0.000000e+00> : vector<32x288xf32>
    %12 = tpu.matmul %1, %11, %cst {dimension_numbers = #tpu.dot_dimension_numbers<[1], [0], [0], [1], [0, 0, 1, 1], [], []>} : vector<32x12xbf16>, vector<12x288xbf16>, vector<32x288xf32> -> vector<32x288xf32>
    %c0_14 = arith.constant 0 : index
    %c0_15 = arith.constant 0 : index
    %c1 = arith.constant 1 : index
    %13 = vector.load %arg1[%c0_14, %c0_15, %c1] : memref<1x12x342xbf16, #tpu.memory_space<vmem>>, vector<1x12x288xbf16>
    %14 = vector.shape_cast %13 : vector<1x12x288xbf16> to vector<12x288xbf16>
    %cst_16 = arith.constant dense<0.000000e+00> : vector<32x288xf32>
    %15 = tpu.matmul %2, %14, %cst_16 {dimension_numbers = #tpu.dot_dimension_numbers<[1], [0], [0], [1], [0, 0, 1, 1], [], []>} : vector<32x12xbf16>, vector<12x288xbf16>, vector<32x288xf32> -> vector<32x288xf32>
    %16 = arith.addf %12, %15 : vector<32x288xf32>
    %c0_17 = arith.constant 0 : index
    %c0_18 = arith.constant 0 : index
    %c2 = arith.constant 2 : index
    %17 = vector.load %arg1[%c0_17, %c0_18, %c2] : memref<1x12x342xbf16, #tpu.memory_space<vmem>>, vector<1x12x288xbf16>
    %18 = vector.shape_cast %17 : vector<1x12x288xbf16> to vector<12x288xbf16>
    %cst_19 = arith.constant dense<0.000000e+00> : vector<32x288xf32>
    %19 = tpu.matmul %3, %18, %cst_19 {dimension_numbers = #tpu.dot_dimension_numbers<[1], [0], [0], [1], [0, 0, 1, 1], [], []>} : vector<32x12xbf16>, vector<12x288xbf16>, vector<32x288xf32> -> vector<32x288xf32>
    %20 = arith.addf %16, %19 : vector<32x288xf32>
    %c0_20 = arith.constant 0 : index
    %c0_21 = arith.constant 0 : index
    %c18 = arith.constant 18 : index
    %21 = vector.load %arg1[%c0_20, %c0_21, %c18] : memref<1x12x342xbf16, #tpu.memory_space<vmem>>, vector<1x12x288xbf16>
    %22 = vector.shape_cast %21 : vector<1x12x288xbf16> to vector<12x288xbf16>
    %cst_22 = arith.constant dense<0.000000e+00> : vector<32x288xf32>
    %23 = tpu.matmul %4, %22, %cst_22 {dimension_numbers = #tpu.dot_dimension_numbers<[1], [0], [0], [1], [0, 0, 1, 1], [], []>} : vector<32x12xbf16>, vector<12x288xbf16>, vector<32x288xf32> -> vector<32x288xf32>
    %24 = arith.addf %20, %23 : vector<32x288xf32>
    %c0_23 = arith.constant 0 : index
    %c0_24 = arith.constant 0 : index
    %c19 = arith.constant 19 : index
    %25 = vector.load %arg1[%c0_23, %c0_24, %c19] : memref<1x12x342xbf16, #tpu.memory_space<vmem>>, vector<1x12x288xbf16>
    %26 = vector.shape_cast %25 : vector<1x12x288xbf16> to vector<12x288xbf16>
    %cst_25 = arith.constant dense<0.000000e+00> : vector<32x288xf32>
    %27 = tpu.matmul %5, %26, %cst_25 {dimension_numbers = #tpu.dot_dimension_numbers<[1], [0], [0], [1], [0, 0, 1, 1], [], []>} : vector<32x12xbf16>, vector<12x288xbf16>, vector<32x288xf32> -> vector<32x288xf32>
    %28 = arith.addf %24, %27 : vector<32x288xf32>
    %c0_26 = arith.constant 0 : index
    %c0_27 = arith.constant 0 : index
    %c20 = arith.constant 20 : index
    %29 = vector.load %arg1[%c0_26, %c0_27, %c20] : memref<1x12x342xbf16, #tpu.memory_space<vmem>>, vector<1x12x288xbf16>
    %30 = vector.shape_cast %29 : vector<1x12x288xbf16> to vector<12x288xbf16>
    %cst_28 = arith.constant dense<0.000000e+00> : vector<32x288xf32>
    %31 = tpu.matmul %6, %30, %cst_28 {dimension_numbers = #tpu.dot_dimension_numbers<[1], [0], [0], [1], [0, 0, 1, 1], [], []>} : vector<32x12xbf16>, vector<12x288xbf16>, vector<32x288xf32> -> vector<32x288xf32>
    %32 = arith.addf %28, %31 : vector<32x288xf32>
    %c0_29 = arith.constant 0 : index
    %c0_30 = arith.constant 0 : index
    %c36 = arith.constant 36 : index
    %33 = vector.load %arg1[%c0_29, %c0_30, %c36] : memref<1x12x342xbf16, #tpu.memory_space<vmem>>, vector<1x12x288xbf16>
    %34 = vector.shape_cast %33 : vector<1x12x288xbf16> to vector<12x288xbf16>
    %cst_31 = arith.constant dense<0.000000e+00> : vector<32x288xf32>
    %35 = tpu.matmul %7, %34, %cst_31 {dimension_numbers = #tpu.dot_dimension_numbers<[1], [0], [0], [1], [0, 0, 1, 1], [], []>} : vector<32x12xbf16>, vector<12x288xbf16>, vector<32x288xf32> -> vector<32x288xf32>
    %36 = arith.addf %32, %35 : vector<32x288xf32>
    %c0_32 = arith.constant 0 : index
    %c0_33 = arith.constant 0 : index
    %c37 = arith.constant 37 : index
    %37 = vector.load %arg1[%c0_32, %c0_33, %c37] : memref<1x12x342xbf16, #tpu.memory_space<vmem>>, vector<1x12x288xbf16>
    %38 = vector.shape_cast %37 : vector<1x12x288xbf16> to vector<12x288xbf16>
    %cst_34 = arith.constant dense<0.000000e+00> : vector<32x288xf32>
    %39 = tpu.matmul %8, %38, %cst_34 {dimension_numbers = #tpu.dot_dimension_numbers<[1], [0], [0], [1], [0, 0, 1, 1], [], []>} : vector<32x12xbf16>, vector<12x288xbf16>, vector<32x288xf32> -> vector<32x288xf32>
    %40 = arith.addf %36, %39 : vector<32x288xf32>
    %c0_35 = arith.constant 0 : index
    %c0_36 = arith.constant 0 : index
    %c38 = arith.constant 38 : index
    %41 = vector.load %arg1[%c0_35, %c0_36, %c38] : memref<1x12x342xbf16, #tpu.memory_space<vmem>>, vector<1x12x288xbf16>
    %42 = vector.shape_cast %41 : vector<1x12x288xbf16> to vector<12x288xbf16>
    %cst_37 = arith.constant dense<0.000000e+00> : vector<32x288xf32>
    %43 = tpu.matmul %9, %42, %cst_37 {dimension_numbers = #tpu.dot_dimension_numbers<[1], [0], [0], [1], [0, 0, 1, 1], [], []>} : vector<32x12xbf16>, vector<12x288xbf16>, vector<32x288xf32> -> vector<32x288xf32>
    %44 = arith.addf %40, %43 : vector<32x288xf32>
    %45 = vector.broadcast %0 : vector<32x1xf32> to vector<32x288xf32>
    %46 = arith.addf %44, %45 : vector<32x288xf32>
    %47 = vector.extract_strided_slice %46 {offsets = [0, 0], sizes = [24, 288], strides = [1, 1]} : vector<32x288xf32> to vector<24x288xf32>
    %48 = arith.negf %47 : vector<24x288xf32>
    %49 = math.exp %48 : vector<24x288xf32>
    %cst_38 = arith.constant 1.000000e+00 : f32
    %50 = vector.broadcast %cst_38 : f32 to vector<24x288xf32>
    %51 = arith.addf %50, %49 : vector<24x288xf32>
    %52 = arith.divf %50, %51 : vector<24x288xf32>
    %53 = vector.extract_strided_slice %46 {offsets = [24, 0], sizes = [8, 288], strides = [1, 1]} : vector<32x288xf32> to vector<8x288xf32>
    %54 = math.tanh %53 : vector<8x288xf32>
    %55 = vector.extract_strided_slice %52 {offsets = [0, 0], sizes = [8, 288], strides = [1, 1]} : vector<24x288xf32> to vector<8x288xf32>
    %56 = vector.extract_strided_slice %52 {offsets = [8, 0], sizes = [8, 288], strides = [1, 1]} : vector<24x288xf32> to vector<8x288xf32>
    %57 = vector.extract_strided_slice %52 {offsets = [16, 0], sizes = [8, 288], strides = [1, 1]} : vector<24x288xf32> to vector<8x288xf32>
    %c0_39 = arith.constant 0 : index
    %c0_40 = arith.constant 0 : index
    %c0_41 = arith.constant 0 : index
    %58 = vector.load %arg2[%c0_39, %c0_40, %c0_41] : memref<1x8x288xf32, #tpu.memory_space<vmem>>, vector<1x8x288xf32>
    %59 = vector.shape_cast %58 : vector<1x8x288xf32> to vector<8x288xf32>
    %60 = arith.mulf %56, %59 : vector<8x288xf32>
    %61 = arith.mulf %55, %54 : vector<8x288xf32>
    %62 = arith.addf %60, %61 : vector<8x288xf32>
    %63 = math.tanh %62 : vector<8x288xf32>
    %64 = arith.mulf %57, %63 : vector<8x288xf32>
    %c0_42 = arith.constant 0 : index
    %c0_43 = arith.constant 0 : index
    %c0_44 = arith.constant 0 : index
    %65 = vector.load %arg5[%c0_42, %c0_43, %c0_44] : memref<1x8x288xf32, #tpu.memory_space<vmem>>, vector<1x8x288xf32>
    %66 = vector.shape_cast %65 : vector<1x8x288xf32> to vector<8x288xf32>
    %67 = vector.shape_cast %64 : vector<8x288xf32> to vector<1x8x288xf32>
    tpu.vector_store %arg5[%c0_42, %c0_43, %c0_44], %67 {strides = array<i32>} : memref<1x8x288xf32, #tpu.memory_space<vmem>>, vector<1x8x288xf32>,
    %c0_45 = arith.constant 0 : index
    %c0_46 = arith.constant 0 : index
    %c0_47 = arith.constant 0 : index
    %68 = vector.load %arg6[%c0_45, %c0_46, %c0_47] : memref<1x8x288xf32, #tpu.memory_space<vmem>>, vector<1x8x288xf32>
    %69 = vector.shape_cast %68 : vector<1x8x288xf32> to vector<8x288xf32>
    %70 = vector.shape_cast %62 : vector<8x288xf32> to vector<1x8x288xf32>
    tpu.vector_store %arg6[%c0_45, %c0_46, %c0_47], %70 {strides = array<i32>} : memref<1x8x288xf32, #tpu.memory_space<vmem>>, vector<1x8x288xf32>,
    return
  }
  func.func @transform_0(%arg0: i32) -> (i32, i32, i32) {
    %c0_i32 = arith.constant 0 : i32
    %c0_i32_0 = arith.constant 0 : i32
    %c0_i32_1 = arith.constant 0 : i32
    return %arg0, %c0_i32, %c0_i32_0 : i32, i32, i32
  }
  func.func @transform_1(%arg0: i32) -> (i32, i32, i32) {
    %c0_i32 = arith.constant 0 : i32
    %c0_i32_0 = arith.constant 0 : i32
    %c0_i32_1 = arith.constant 0 : i32
    return %arg0, %c0_i32, %c0_i32_0 : i32, i32, i32
  }
  func.func @transform_2(%arg0: i32) -> (i32, i32) {
    %c0_i32 = arith.constant 0 : i32
    %c0_i32_0 = arith.constant 0 : i32
    %c0_i32_1 = arith.constant 0 : i32
    return %c0_i32, %c0_i32_0 : i32, i32
  }
  func.func @transform_3(%arg0: i32) -> (i32, i32) {
    %c0_i32 = arith.constant 0 : i32
    %c0_i32_0 = arith.constant 0 : i32
    %c0_i32_1 = arith.constant 0 : i32
    return %c0_i32, %c0_i32_0 : i32, i32
  }
  func.func @transform_4(%arg0: i32) -> (i32, i32, i32) {
    %c0_i32 = arith.constant 0 : i32
    %c0_i32_0 = arith.constant 0 : i32
    %c0_i32_1 = arith.constant 0 : i32
    return %arg0, %c0_i32, %c0_i32_0 : i32, i32, i32
  }
  func.func @transform_5(%arg0: i32) -> (i32, i32, i32) {
    %c0_i32 = arith.constant 0 : i32
    %c0_i32_0 = arith.constant 0 : i32
    %c0_i32_1 = arith.constant 0 : i32
    return %arg0, %c0_i32, %c0_i32_0 : i32, i32, i32
  }
}

</mosaic_0001>

<llo_original>
// kernel: clstm_cell.1
$region0: #{clstm_cell.1}
  #allocation0 [shape = 'u32[]', space=smem, size = 0x4, offset = 0x4, fixed_abs, tag = 'smem constant byte address 0x4 - core index']
  #allocation1 [shape = 'u32[144,128]{1,0:T(1,128)}', space=vmem, size = 0x12000, scoped, tag = 'internal scratch']
  %s0 = inlined_call_operand.vmem [shape: bf16[2,12,342], index: 0, kind: input, shape index: {}]
  %s1 = inlined_call_operand.vmem [shape: f32[2,8,288], index: 1, kind: input, shape index: {}]
  %s2 = inlined_call_operand.vmem [shape: bf16[288,12], index: 2, kind: input, shape index: {}]
  %s3 = inlined_call_operand.vmem [shape: f32[32,1], index: 3, kind: input, shape index: {}]
  %s4 = inlined_call_operand.vmem [shape: f32[2,8,288], index: 4, kind: output, shape index: {0}]
  %s5 = inlined_call_operand.vmem [shape: f32[2,8,288], index: 5, kind: output, shape index: {1}]
  %6 = xla_tuple %s4, %s5
  %s7 = sld [smem:[#allocation0]]
  $region57: #{clstm_cell.1} parent=0
    _
  %s9 = ssub.s32 1, %s7
  %s10 = scalar_select 0, %s9, %s7
  loop: start=0, step=1, limit=4
  $region2: #{clstm_cell.1} parent=0 // loop_pre_header
    _
  $region3: #{clstm_cell.1} parent=0 // loop_header
    %s12 = sphi 0, %s16
    %p13 = scmp.ge.s32.totalorder %s12, 4
    %s22 = sphi 0, %s24
    %s25 = sphi 0, %s22
    %s26 = sphi 0, %s25
    %s42 = sphi 0, %s26
    %s48 = sphi 0, %s50
    %s51 = sphi 0, %s48
    %s52 = sphi 0, %s51
    %s68 = sphi 0, %s52
    %s72 = sphi 0, %s72
    %s74 = sphi 0, %s72
    %s75 = sphi 0, %s74
    %s89 = sphi 0, %s75
    %s93 = sphi 0, %s93
    %s95 = sphi 0, %s93
    %s96 = sphi 0, %s95
    %s110 = sphi 0, %s96
    %s116 = sphi 0, %s118
    %s119 = sphi 0, %s116
    %s120 = sphi 0, %s119
    %s136 = sphi 0, %s120
    %s142 = sphi 0, %s144
    %s145 = sphi 0, %s142
    %s146 = sphi 0, %s145
    %s162 = sphi 0, %s146
  $region4: #{clstm_cell.1} parent=0 // loop_header_branch
    %15 = sbr.rel (%p13) target = $region8
  $region5: #{clstm_cell.1} parent=0 // loop_body
    %s17 = ssub.s32 %s12, 1
    %s18 = ssub.s32 %s12, 2
    %s19 = sadd.s32 %s12, 1
    %s20 = ssub.s32 %s12, %s19
    %p21 = scmp.eq.s32.totalorder %s20, 0
    %s23 = sadd.s32 %s22, 1
    %s24 = scalar_select %p21, %s22, %s23
    %p27 = pneg %p21
    %p28 = scmp.eq.s32.totalorder %s12, 1
    %p29 = por %p27, %p28
    %p30 = scmp.ne.s32.totalorder %s22, %s25
    %p31 = scmp.eq.s32.totalorder %s12, 0
    %p32 = por %p30, %p31
    %p33 = scmp.ne.s32.totalorder %s22, %s25
    %p34 = scmp.eq.s32.totalorder %s17, 1
    %p35 = por %p33, %p34
    %p36 = scmp.ne.s32.totalorder %s25, %s26
    %p37 = scmp.eq.s32.totalorder %s17, 0
    %p38 = por %p36, %p37
    %p39 = scmp.ne.s32.totalorder %s25, %s26
    %p40 = scmp.eq.s32.totalorder %s18, 1
    %p41 = por %p39, %p40
    %p43 = scmp.ne.s32.totalorder %s26, %s42
    %p44 = scmp.eq.s32.totalorder %s18, 0
    %p45 = por %p43, %p44
    %s46 = ssub.s32 %s12, %s19
    %p47 = scmp.eq.s32.totalorder %s46, 0
    %s49 = sadd.s32 %s48, 1
    %s50 = scalar_select %p47, %s48, %s49
    %p53 = pneg %p47
    %p54 = scmp.eq.s32.totalorder %s12, 1
    %p55 = por %p53, %p54
    %p56 = scmp.ne.s32.totalorder %s48, %s51
    %p57 = scmp.eq.s32.totalorder %s12, 0
    %p58 = por %p56, %p57
    %p59 = scmp.ne.s32.totalorder %s48, %s51
    %p60 = scmp.eq.s32.totalorder %s17, 1
    %p61 = por %p59, %p60
    %p62 = scmp.ne.s32.totalorder %s51, %s52
    %p63 = scmp.eq.s32.totalorder %s17, 0
    %p64 = por %p62, %p63
    %p65 = scmp.ne.s32.totalorder %s51, %s52
    %p66 = scmp.eq.s32.totalorder %s18, 1
    %p67 = por %p65, %p66
    %p69 = scmp.ne.s32.totalorder %s52, %s68
    %p70 = scmp.eq.s32.totalorder %s18, 0
    %p71 = por %p69, %p70
    %s73 = sadd.s32 %s72, 1
    %p76 = scmp.eq.s32.totalorder %s12, 1
    %p77 = scmp.ne.s32.totalorder %s72, %s74
    %p78 = scmp.eq.s32.totalorder %s12, 0
    %p79 = por %p77, %p78
    %p80 = scmp.ne.s32.totalorder %s72, %s74
    %p81 = scmp.eq.s32.totalorder %s17, 1
    %p82 = por %p80, %p81
    %p83 = scmp.ne.s32.totalorder %s74, %s75
    %p84 = scmp.eq.s32.totalorder %s17, 0
    %p85 = por %p83, %p84
    %p86 = scmp.ne.s32.totalorder %s74, %s75
    %p87 = scmp.eq.s32.totalorder %s18, 1
    %p88 = por %p86, %p87
    %p90 = scmp.ne.s32.totalorder %s75, %s89
    %p91 = scmp.eq.s32.totalorder %s18, 0
    %p92 = por %p90, %p91
    %s94 = sadd.s32 %s93, 1
    %p97 = scmp.eq.s32.totalorder %s12, 1
    %p98 = scmp.ne.s32.totalorder %s93, %s95
    %p99 = scmp.eq.s32.totalorder %s12, 0
    %p100 = por %p98, %p99
    %p101 = scmp.ne.s32.totalorder %s93, %s95
    %p102 = scmp.eq.s32.totalorder %s17, 1
    %p103 = por %p101, %p102
    %p104 = scmp.ne.s32.totalorder %s95, %s96
    %p105 = scmp.eq.s32.totalorder %s17, 0
    %p106 = por %p104, %p105
    %p107 = scmp.ne.s32.totalorder %s95, %s96
    %p108 = scmp.eq.s32.totalorder %s18, 1
    %p109 = por %p107, %p108
    %p111 = scmp.ne.s32.totalorder %s96, %s110
    %p112 = scmp.eq.s32.totalorder %s18, 0
    %p113 = por %p111, %p112
    %s114 = ssub.s32 %s12, %s19
    %p115 = scmp.eq.s32.totalorder %s114, 0
    %s117 = sadd.s32 %s116, 1
    %s118 = scalar_select %p115, %s116, %s117
    %p121 = pneg %p115
    %p122 = scmp.eq.s32.totalorder %s12, 1
    %p123 = por %p121, %p122
    %p124 = scmp.ne.s32.totalorder %s116, %s119
    %p125 = scmp.eq.s32.totalorder %s12, 0
    %p126 = por %p124, %p125
    %p127 = scmp.ne.s32.totalorder %s116, %s119
    %p128 = scmp.eq.s32.totalorder %s17, 1
    %p129 = por %p127, %p128
    %p130 = scmp.ne.s32.totalorder %s119, %s120
    %p131 = scmp.eq.s32.totalorder %s17, 0
    %p132 = por %p130, %p131
    %p133 = scmp.ne.s32.totalorder %s119, %s120
    %p134 = scmp.eq.s32.totalorder %s18, 1
    %p135 = por %p133, %p134
    %p137 = scmp.ne.s32.totalorder %s120, %s136
    %p138 = scmp.eq.s32.totalorder %s18, 0
    %p139 = por %p137, %p138
    %s140 = ssub.s32 %s12, %s19
    %p141 = scmp.eq.s32.totalorder %s140, 0
    %s143 = sadd.s32 %s142, 1
    %s144 = scalar_select %p141, %s142, %s143
    %p147 = pneg %p141
    %p148 = scmp.eq.s32.totalorder %s12, 1
    %p149 = por %p147, %p148
    %p150 = scmp.ne.s32.totalorder %s142, %s145
    %p151 = scmp.eq.s32.totalorder %s12, 0
    %p152 = por %p150, %p151
    %p153 = scmp.ne.s32.totalorder %s142, %s145
    %p154 = scmp.eq.s32.totalorder %s17, 1
    %p155 = por %p153, %p154
    %p156 = scmp.ne.s32.totalorder %s145, %s146
    %p157 = scmp.eq.s32.totalorder %s17, 0
    %p158 = por %p156, %p157
    %p159 = scmp.ne.s32.totalorder %s145, %s146
    %p160 = scmp.eq.s32.totalorder %s18, 1
    %p161 = por %p159, %p160
    %p163 = scmp.ne.s32.totalorder %s146, %s162
    %p164 = scmp.eq.s32.totalorder %s18, 0
    %p165 = por %p163, %p164
    %p166 = scmp.le.s32.totalorder 1, %s12
    %p167 = scmp.lt.s32.totalorder %s12, 3
    %p168 = pnand %p166, %p167
    %p169 = pneg %p168
    // Predicated region
    $region9: #{clstm_cell.1} parent=5 // pred_check
      _
    $region10: #{clstm_cell.1} parent=5 // pred_check_branch
      %171 = sbr.rel (%p168) target = $region12
    $region11: #{clstm_cell.1} parent=5 // pred_region
      %s172 = ssub.s32 %s12, 1
      // Predicated region
      $region13: #{clstm_cell.1} parent=11 // pred_check
        %p173 = pneg %p85
      $region14: #{clstm_cell.1} parent=11 // pred_check_branch
        %175 = sbr.rel (%p173) target = $region16
      $region15: #{clstm_cell.1} parent=11 // pred_region
        _
      $region16: #{clstm_cell.1} parent=11 // pred_fallthru
        _
      // Predicated region
      $region17: #{clstm_cell.1} parent=11 // pred_check
        %p176 = pneg %p106
      $region18: #{clstm_cell.1} parent=11 // pred_check_branch
        %178 = sbr.rel (%p176) target = $region20
      $region19: #{clstm_cell.1} parent=11 // pred_region
        _
      $region20: #{clstm_cell.1} parent=11 // pred_fallthru
        _
    $region12: #{clstm_cell.1} parent=5 // pred_fallthru
      _
    %p179 = scmp.lt.s32.totalorder %s12, 2
    // Predicated region
    $region21: #{clstm_cell.1} parent=5 // pred_check
      %p180 = pneg %p179
    $region22: #{clstm_cell.1} parent=5 // pred_check_branch
      %182 = sbr.rel (%p180) target = $region24
    $region23: #{clstm_cell.1} parent=5 // pred_region
      // Predicated region
      $region25: #{clstm_cell.1} parent=23 // pred_check
        %p183 = pneg %p32
      $region26: #{clstm_cell.1} parent=23 // pred_check_branch
        %185 = sbr.rel (%p183) target = $region28
      $region27: #{clstm_cell.1} parent=23 // pred_region
        %p186 = scmp.lt.s32.totalorder %s12, 1
        %s187 = scalar_select %p186, %s12, 1
        %s188 = smul.addr %s187, 6
        %s189 = smul.addr %s188, 4
        %s190 = scalar_lea.vmem %s0, %s189
      $region28: #{clstm_cell.1} parent=23 // pred_fallthru
        _
      // Predicated region
      $region29: #{clstm_cell.1} parent=23 // pred_check
        %p191 = pneg %p58
      $region30: #{clstm_cell.1} parent=23 // pred_check_branch
        %193 = sbr.rel (%p191) target = $region32
      $region31: #{clstm_cell.1} parent=23 // pred_region
        %p194 = scmp.lt.s32.totalorder %s12, 1
        %s195 = scalar_select %p194, %s12, 1
        %s196 = smul.addr %s195, 3
        %s197 = smul.addr %s196, 8
        %s198 = scalar_lea.vmem %s1, %s197
      $region32: #{clstm_cell.1} parent=23 // pred_fallthru
        _
    $region24: #{clstm_cell.1} parent=5 // pred_fallthru
      _
    %p199 = scmp.le.s32.totalorder 1, %s12
    %p200 = scmp.lt.s32.totalorder %s12, 3
    %p201 = pnand %p199, %p200
    %p202 = pneg %p201
    // Predicated region
    $region33: #{clstm_cell.1} parent=5 // pred_check
      _
    $region34: #{clstm_cell.1} parent=5 // pred_check_branch
      %204 = sbr.rel (%p201) target = $region36
    $region35: #{clstm_cell.1} parent=5 // pred_region
      %s205 = ssub.s32 %s12, 1
      %p206 = scmp.lt.s32.totalorder %s17, 1
      %s207 = scalar_select %p206, %s17, 1
      %s208 = smul.addr %s207, 6
      %s209 = smul.addr %s208, 4
      %s210 = scalar_lea.vmem %s0, %s209
      %p211 = pneg %p38
      %p212 = pneg %p35
      %p213 = scmp.lt.s32.totalorder %s17, 1
      %s214 = scalar_select %p213, %s17, 1
      %s215 = smul.addr %s214, 3
      %s216 = smul.addr %s215, 8
      %s217 = scalar_lea.vmem %s1, %s216
      %p218 = pneg %p64
      %p219 = pneg %p61
      %p220 = pneg %p85
      %p221 = pneg %p82
      %p222 = pneg %p106
      %p223 = pneg %p103
      %p224 = pneg %p132
      %p225 = pneg %p129
      %p226 = scmp.lt.s32.totalorder %s17, 1
      %s227 = scalar_select %p226, %s17, 1
      %s228 = smul.addr %s227, 3
      %s229 = smul.addr %s228, 8
      %s230 = scalar_lea.vmem %s4, %s229
      %p231 = pneg %p158
      %p232 = pneg %p155
      %p233 = scmp.lt.s32.totalorder %s17, 1
      %s234 = scalar_select %p233, %s17, 1
      %s235 = smul.addr %s234, 3
      %s236 = smul.addr %s235, 8
      %s237 = scalar_lea.vmem %s5, %s236
      %p238 = scmp.lt.s32.totalorder %s17, 1
      %s239 = scalar_select %p238, %s17, 1
      %s240 = smul.addr %s239, 6
      %s241 = smul.addr %s240, 4
      %s242 = scalar_lea.vmem %s0, %s241
      %p243 = scmp.lt.s32.totalorder %s17, 1
      %s244 = scalar_select %p243, %s17, 1
      %s245 = smul.addr %s244, 3
      %s246 = smul.addr %s245, 8
      %s247 = scalar_lea.vmem %s1, %s246
      %p248 = scmp.lt.s32.totalorder %s17, 1
      %s249 = scalar_select %p248, %s17, 1
      %s250 = smul.addr %s249, 3
      %s251 = smul.addr %s250, 8
      %s252 = scalar_lea.vmem %s4, %s251
      %p253 = scmp.lt.s32.totalorder %s17, 1
      %s254 = scalar_select %p253, %s17, 1
      %s255 = smul.addr %s254, 3
      %s256 = smul.addr %s255, 8
      %s257 = scalar_lea.vmem %s5, %s256
      %v259 = vld [vmem:[%s3] sm:$0xff]
      %v260 = vld [vmem:[%s3 + $0x8] sm:$0xff]
      %v261 = vld [vmem:[%s3 + $0x10] sm:$0xff]
      %v262 = vld [vmem:[%s3 + $0x18] sm:$0xff]
      %v263 = vld [vmem:[%s2] sm:$0xf]
      %v264 = vld [vmem:[%s2 + $0x4] sm:$0xf]
      %v265 = vld [vmem:[%s2 + $0x8] sm:$0xf]
      %v266 = vld [vmem:[%s2 + $0xc] sm:$0xf]
      %v267 = vld [vmem:[%s2 + $0x10] sm:$0xf]
      %v268 = vld [vmem:[%s2 + $0x14] sm:$0xf]
      %v269 = vld [vmem:[%s2 + $0x18] sm:$0xf]
      %v270 = vld [vmem:[%s2 + $0x1c] sm:$0xf]
      %v271 = vld [vmem:[%s2 + $0x20] sm:$0xf]
      %v272 = vld [vmem:[%s2 + $0x24] sm:$0xf]
      %v273 = vld [vmem:[%s2 + $0x28] sm:$0xf]
      %v274 = vld [vmem:[%s2 + $0x2c] sm:$0xf]
      %v275 = vld [vmem:[%s2 + $0x30] sm:$0xf]
      %v276 = vld [vmem:[%s2 + $0x34] sm:$0xf]
      %v277 = vld [vmem:[%s2 + $0x38] sm:$0xf]
      %v278 = vld [vmem:[%s2 + $0x3c] sm:$0xf]
      %v279 = vld [vmem:[%s2 + $0x40] sm:$0xf]
      %v280 = vld [vmem:[%s2 + $0x44] sm:$0xf]
      %v281 = vld [vmem:[%s2 + $0x48] sm:$0xf]
      %v282 = vld [vmem:[%s2 + $0x4c] sm:$0xf]
      %v283 = vld [vmem:[%s2 + $0x50] sm:$0xf]
      %v284 = vld [vmem:[%s2 + $0x54] sm:$0xf]
      %v285 = vld [vmem:[%s2 + $0x58] sm:$0xf]
      %v286 = vld [vmem:[%s2 + $0x5c] sm:$0xf]
      %v287 = vld [vmem:[%s2 + $0x60] sm:$0xf]
      %v288 = vld [vmem:[%s2 + $0x64] sm:$0xf]
      %v289 = vld [vmem:[%s2 + $0x68] sm:$0xf]
      %v290 = vld [vmem:[%s2 + $0x6c] sm:$0xf]
      %v291 = vld [vmem:[%s2 + $0x70] sm:$0xf]
      %v292 = vld [vmem:[%s2 + $0x74] sm:$0xf]
      %v293 = vld [vmem:[%s2 + $0x78] sm:$0xf]
      %v294 = vld [vmem:[%s2 + $0x7c] sm:$0xf]
      %v295 = vld [vmem:[%s2 + $0x80] sm:$0xf]
      %v296 = vld [vmem:[%s2 + $0x84] sm:$0xf]
      %v297 = vld [vmem:[%s2 + $0x88] sm:$0xf]
      %v298 = vld [vmem:[%s2 + $0x8c] sm:$0xf]
      %v299 = vld [vmem:[%s242] sm:$0xff]
      %v300 = vld [vmem:[%s242 + $0x8] sm:$0xf]
      %v301 = vld [vmem:[%s242 + $0xc] sm:$0x33]
      %v302 = vld [vmem:[%s242 + $0x14] sm:$0x3]
      %v307 = vunpack.c.l.b16 %v267
      %v308 = vunpack.c.l.b16 %v268
      %v309 = vunpack.c.l.b16 %v269
      %v310 = vunpack.c.l.b16 %v270
      %v311 = vpack.c.b16 %v308, %v307
      %v312 = vpack.c.b16 %v310, %v309
      %v317 = vunpack.c.l.b16 %v299
      %v318 = vunpack.c.h.b16 %v299
      %v319 = vunpack.c.l.b16 %v300
      %v320 = vunpack.c.l.b16 %v301
      %v321 = vunpack.c.h.b16 %v301
      %v322 = vunpack.c.l.b16 %v302
      %v323 = vpack.c.b16 %v320, %v317
      %v324 = vpack.c.b16 %v321, %v318
      %v325 = vpack.c.b16 %v322, %v319
      %326 = vrot.lane.b32.xlu0 %v323, 127
      %v327 = vpop.permute.xlu0 %326
      %328 = vrot.lane.b32.xlu0 %v324, 127
      %v329 = vpop.permute.xlu0 %328
      %330 = vrot.lane.b32.xlu0 %v325, 127
      %v331 = vpop.permute.xlu0 %330
      %vm332 = vcmask 1039360
      %v333 = vsel %vm332, %v327, %v329
      %v334 = vsel %vm332, %v329, %v331
      %vm335 = vcmask 97280
      %v337 = vsel %vm335, %v311, 0
      %v340 = vsel %vm335, %v312, 0
      %vm342 = vcmask 1045504
      %v344 = vsel %vm342, %v333, 0
      %v347 = vsel %vm342, %v334, 0
      %v350 = vsel %vm342, %v331, 0
      %352 = vmatprep.subr.bf16.mxu0 %v347
      %353 = vmatpush1.bf16.msra.mxu0 %v344
      %354 = vmatprep.subr.bf16.mxu0 0
      %355 = vmatpush1.bf16.msra.mxu0 0
      %356 = vmatprep.subr.bf16.mxu0 0
      %357 = vmatpush1.bf16.msra.mxu0 0
      %358 = vmatprep.subr.bf16.mxu0 0
      %359 = vmatpush1.bf16.msra.mxu0 0
      %360 = vmatprep.subr.bf16.mxu0 0
      %361 = vmatpush1.bf16.msra.mxu0 0
      %362 = vmatprep.subr.bf16.mxu0 0
      %363 = vmatpush1.bf16.msra.mxu0 0
      %364 = vmatprep.subr.bf16.mxu0 0
      %365 = vmatpush1.bf16.msra.mxu0 0
      %366 = vmatprep.subr.bf16.mxu0 0
      %367 = vmatpush1.bf16.msra.mxu0 0
      %368 = vmatprep.subr.bf16.mxu0 0
      %369 = vmatpush1.bf16.msra.mxu0 0
      %370 = vmatprep.subr.bf16.mxu0 0
      %371 = vmatpush1.bf16.msra.mxu0 0
      %372 = vmatprep.subr.bf16.mxu0 0
      %373 = vmatpush1.bf16.msra.mxu0 0
      %374 = vmatprep.subr.bf16.mxu0 0
      %375 = vmatpush1.bf16.msra.mxu0 0
      %376 = vmatprep.subr.bf16.mxu0 0
      %377 = vmatpush1.bf16.msra.mxu0 0
      %378 = vmatprep.subr.bf16.mxu0 0
      %379 = vmatpush1.bf16.msra.mxu0 0
      %380 = vmatprep.subr.bf16.mxu0 0
      %381 = vmatpush1.bf16.msra.mxu0 0
      %382 = vmatprep.subr.bf16.mxu0 0
      %383 = vmatpush1.bf16.msra.mxu0 0
      %384 = vmatprep.mubr.bf16.mxu0 0
      %385 = vmatmul.mubr.bf16.gmra.mrb[0].mxu0 %v337
      %v386 = vpop.f32.mrb[0].mxu0
      %v387 = vadd.f32 0.0, %v386
      %v388 = vpop.f32.mrb[0].mxu0
      %v389 = vadd.f32 0.0, %v388
      %v390 = vpop.f32.mrb[0].mxu0
      %v391 = vadd.f32 0.0, %v390
      %v392 = vpop.f32.mrb[0].mxu0
      %v393 = vadd.f32 0.0, %v392
      %394 = vmatprep.mubr.bf16.mxu0 0
      %395 = vmatmul.mubr.bf16.gmra.mrb[0].mxu0 %v340
      %v396 = vpop.f32.mrb[0].mxu0
      %v397 = vadd.f32 0.0, %v396
      %v398 = vpop.f32.mrb[0].mxu0
      %v399 = vadd.f32 0.0, %v398
      %v400 = vpop.f32.mrb[0].mxu0
      %v401 = vadd.f32 0.0, %v400
      %v402 = vpop.f32.mrb[0].mxu0
      %v403 = vadd.f32 0.0, %v402
      %404 = vdwg.mxu0
      %405 = vmatprep.subr.bf16.mxu0 0
      %406 = vmatpush1.bf16.msra.mxu0 %v350
      %407 = vmatprep.subr.bf16.mxu0 0
      %408 = vmatpush1.bf16.msra.mxu0 0
      %409 = vmatprep.subr.bf16.mxu0 0
      %410 = vmatpush1.bf16.msra.mxu0 0
      %411 = vmatprep.subr.bf16.mxu0 0
      %412 = vmatpush1.bf16.msra.mxu0 0
      %413 = vmatprep.subr.bf16.mxu0 0
      %414 = vmatpush1.bf16.msra.mxu0 0
      %415 = vmatprep.subr.bf16.mxu0 0
      %416 = vmatpush1.bf16.msra.mxu0 0
      %417 = vmatprep.subr.bf16.mxu0 0
      %418 = vmatpush1.bf16.msra.mxu0 0
      %419 = vmatprep.subr.bf16.mxu0 0
      %420 = vmatpush1.bf16.msra.mxu0 0
      %421 = vmatprep.subr.bf16.mxu0 0
      %422 = vmatpush1.bf16.msra.mxu0 0
      %423 = vmatprep.subr.bf16.mxu0 0
      %424 = vmatpush1.bf16.msra.mxu0 0
      %425 = vmatprep.subr.bf16.mxu0 0
      %426 = vmatpush1.bf16.msra.mxu0 0
      %427 = vmatprep.subr.bf16.mxu0 0
      %428 = vmatpush1.bf16.msra.mxu0 0
      %429 = vmatprep.subr.bf16.mxu0 0
      %430 = vmatpush1.bf16.msra.mxu0 0
      %431 = vmatprep.subr.bf16.mxu0 0
      %432 = vmatpush1.bf16.msra.mxu0 0
      %433 = vmatprep.subr.bf16.mxu0 0
      %434 = vmatpush1.bf16.msra.mxu0 0
      %435 = vmatprep.subr.bf16.mxu0 0
      %436 = vmatpush1.bf16.msra.mxu0 0
      %437 = vmatprep.mubr.bf16.mxu0 0
      %438 = vmatmul.mubr.bf16.gmra.mrb[0].mxu0 %v337
      %v439 = vpop.f32.mrb[0].mxu0
      %v440 = vadd.f32 0.0, %v439
      %v441 = vpop.f32.mrb[0].mxu0
      %v442 = vpop.f32.mrb[0].mxu0
      %v443 = vadd.f32 0.0, %v442
      %v444 = vpop.f32.mrb[0].mxu0
      %445 = vmatprep.mubr.bf16.mxu0 0
      %446 = vmatmul.mubr.bf16.gmra.mrb[0].mxu0 %v340
      %v447 = vpop.f32.mrb[0].mxu0
      %v448 = vadd.f32 0.0, %v447
      %v449 = vpop.f32.mrb[0].mxu0
      %v450 = vpop.f32.mrb[0].mxu0
      %v451 = vadd.f32 0.0, %v450
      %v452 = vpop.f32.mrb[0].mxu0
      %453 = vdwg.mxu0
      %v458 = vunpack.c.l.b16 %v263
      %v459 = vunpack.c.l.b16 %v264
      %v460 = vunpack.c.l.b16 %v265
      %v461 = vunpack.c.l.b16 %v266
      %v462 = vpack.c.b16 %v459, %v458
      %v463 = vpack.c.b16 %v461, %v460
      %v465 = vsel %vm335, %v462, 0
      %v468 = vsel %vm335, %v463, 0
      %v471 = vsel %vm342, %v323, 0
      %v474 = vsel %vm342, %v324, 0
      %v477 = vsel %vm342, %v325, 0
      %479 = vmatprep.subr.bf16.mxu0 %v474
      %480 = vmatpush1.bf16.msra.mxu0 %v471
      %481 = vmatprep.subr.bf16.mxu0 0
      %482 = vmatpush1.bf16.msra.mxu0 0
      %483 = vmatprep.subr.bf16.mxu0 0
      %484 = vmatpush1.bf16.msra.mxu0 0
      %485 = vmatprep.subr.bf16.mxu0 0
      %486 = vmatpush1.bf16.msra.mxu0 0
      %487 = vmatprep.subr.bf16.mxu0 0
      %488 = vmatpush1.bf16.msra.mxu0 0
      %489 = vmatprep.subr.bf16.mxu0 0
      %490 = vmatpush1.bf16.msra.mxu0 0
      %491 = vmatprep.subr.bf16.mxu0 0
      %492 = vmatpush1.bf16.msra.mxu0 0
      %493 = vmatprep.subr.bf16.mxu0 0
      %494 = vmatpush1.bf16.msra.mxu0 0
      %495 = vmatprep.subr.bf16.mxu0 0
      %496 = vmatpush1.bf16.msra.mxu0 0
      %497 = vmatprep.subr.bf16.mxu0 0
      %498 = vmatpush1.bf16.msra.mxu0 0
      %499 = vmatprep.subr.bf16.mxu0 0
      %500 = vmatpush1.bf16.msra.mxu0 0
      %501 = vmatprep.subr.bf16.mxu0 0
      %502 = vmatpush1.bf16.msra.mxu0 0
      %503 = vmatprep.subr.bf16.mxu0 0
      %504 = vmatpush1.bf16.msra.mxu0 0
      %505 = vmatprep.subr.bf16.mxu0 0
      %506 = vmatpush1.bf16.msra.mxu0 0
      %507 = vmatprep.subr.bf16.mxu0 0
      %508 = vmatpush1.bf16.msra.mxu0 0
      %509 = vmatprep.subr.bf16.mxu0 0
      %510 = vmatpush1.bf16.msra.mxu0 0
      %511 = vmatprep.mubr.bf16.mxu0 0
      %512 = vmatmul.mubr.bf16.gmra.mrb[0].mxu0 %v465
      %v513 = vpop.f32.mrb[0].mxu0
      %v514 = vadd.f32 %v387, %v513
      %v515 = vpop.f32.mrb[0].mxu0
      %v516 = vadd.f32 %v389, %v515
      %v517 = vpop.f32.mrb[0].mxu0
      %v518 = vadd.f32 %v391, %v517
      %v519 = vpop.f32.mrb[0].mxu0
      %v520 = vadd.f32 %v393, %v519
      %521 = vmatprep.mubr.bf16.mxu0 0
      %522 = vmatmul.mubr.bf16.gmra.mrb[0].mxu0 %v468
      %v523 = vpop.f32.mrb[0].mxu0
      %v524 = vadd.f32 %v397, %v523
      %v525 = vpop.f32.mrb[0].mxu0
      %v526 = vadd.f32 %v399, %v525
      %v527 = vpop.f32.mrb[0].mxu0
      %v528 = vadd.f32 %v401, %v527
      %v529 = vpop.f32.mrb[0].mxu0
      %v530 = vadd.f32 %v403, %v529
      %531 = vdwg.mxu0
      %532 = vmatprep.subr.bf16.mxu0 0
      %533 = vmatpush1.bf16.msra.mxu0 %v477
      %534 = vmatprep.subr.bf16.mxu0 0
      %535 = vmatpush1.bf16.msra.mxu0 0
      %536 = vmatprep.subr.bf16.mxu0 0
      %537 = vmatpush1.bf16.msra.mxu0 0
      %538 = vmatprep.subr.bf16.mxu0 0
      %539 = vmatpush1.bf16.msra.mxu0 0
      %540 = vmatprep.subr.bf16.mxu0 0
      %541 = vmatpush1.bf16.msra.mxu0 0
      %542 = vmatprep.subr.bf16.mxu0 0
      %543 = vmatpush1.bf16.msra.mxu0 0
      %544 = vmatprep.subr.bf16.mxu0 0
      %545 = vmatpush1.bf16.msra.mxu0 0
      %546 = vmatprep.subr.bf16.mxu0 0
      %547 = vmatpush1.bf16.msra.mxu0 0
      %548 = vmatprep.subr.bf16.mxu0 0
      %549 = vmatpush1.bf16.msra.mxu0 0
      %550 = vmatprep.subr.bf16.mxu0 0
      %551 = vmatpush1.bf16.msra.mxu0 0
      %552 = vmatprep.subr.bf16.mxu0 0
      %553 = vmatpush1.bf16.msra.mxu0 0
      %554 = vmatprep.subr.bf16.mxu0 0
      %555 = vmatpush1.bf16.msra.mxu0 0
      %556 = vmatprep.subr.bf16.mxu0 0
      %557 = vmatpush1.bf16.msra.mxu0 0
      %558 = vmatprep.subr.bf16.mxu0 0
      %559 = vmatpush1.bf16.msra.mxu0 0
      %560 = vmatprep.subr.bf16.mxu0 0
      %561 = vmatpush1.bf16.msra.mxu0 0
      %562 = vmatprep.subr.bf16.mxu0 0
      %563 = vmatpush1.bf16.msra.mxu0 0
      %564 = vmatprep.mubr.bf16.mxu0 0
      %565 = vmatmul.mubr.bf16.gmra.mrb[0].mxu0 %v465
      %v566 = vpop.f32.mrb[0].mxu0
      %v567 = vadd.f32 %v440, %v566
      %v568 = vpop.f32.mrb[0].mxu0
      %v569 = vpop.f32.mrb[0].mxu0
      %v570 = vadd.f32 %v443, %v569
      %v571 = vpop.f32.mrb[0].mxu0
      %572 = vmatprep.mubr.bf16.mxu0 0
      %573 = vmatmul.mubr.bf16.gmra.mrb[0].mxu0 %v468
      %v574 = vpop.f32.mrb[0].mxu0
      %v575 = vadd.f32 %v448, %v574
      %v576 = vpop.f32.mrb[0].mxu0
      %v577 = vpop.f32.mrb[0].mxu0
      %v578 = vadd.f32 %v451, %v577
      %v579 = vpop.f32.mrb[0].mxu0
      %580 = vdwg.mxu0
      %v585 = vunpack.c.l.b16 %v271
      %v586 = vunpack.c.l.b16 %v272
      %v587 = vunpack.c.l.b16 %v273
      %v588 = vunpack.c.l.b16 %v274
      %v589 = vpack.c.b16 %v586, %v585
      %v590 = vpack.c.b16 %v588, %v587
      %591 = vrot.lane.b32.xlu0 %v323, 126
      %v592 = vpop.permute.xlu0 %591
      %593 = vrot.lane.b32.xlu0 %v324, 126
      %v594 = vpop.permute.xlu0 %593
      %595 = vrot.lane.b32.xlu0 %v325, 126
      %v596 = vpop.permute.xlu0 %595
      %vm597 = vcmask 1031168
      %v598 = vsel %vm597, %v592, %v594
      %v599 = vsel %vm597, %v594, %v596
      %v601 = vsel %vm335, %v589, 0
      %v604 = vsel %vm335, %v590, 0
      %v607 = vsel %vm342, %v598, 0
      %v610 = vsel %vm342, %v599, 0
      %v613 = vsel %vm342, %v596, 0
      %615 = vmatprep.subr.bf16.mxu0 %v610
      %616 = vmatpush1.bf16.msra.mxu0 %v607
      %617 = vmatprep.subr.bf16.mxu0 0
      %618 = vmatpush1.bf16.msra.mxu0 0
      %619 = vmatprep.subr.bf16.mxu0 0
      %620 = vmatpush1.bf16.msra.mxu0 0
      %621 = vmatprep.subr.bf16.mxu0 0
      %622 = vmatpush1.bf16.msra.mxu0 0
      %623 = vmatprep.subr.bf16.mxu0 0
      %624 = vmatpush1.bf16.msra.mxu0 0
      %625 = vmatprep.subr.bf16.mxu0 0
      %626 = vmatpush1.bf16.msra.mxu0 0
      %627 = vmatprep.subr.bf16.mxu0 0
      %628 = vmatpush1.bf16.msra.mxu0 0
      %629 = vmatprep.subr.bf16.mxu0 0
      %630 = vmatpush1.bf16.msra.mxu0 0
      %631 = vmatprep.subr.bf16.mxu0 0
      %632 = vmatpush1.bf16.msra.mxu0 0
      %633 = vmatprep.subr.bf16.mxu0 0
      %634 = vmatpush1.bf16.msra.mxu0 0
      %635 = vmatprep.subr.bf16.mxu0 0
      %636 = vmatpush1.bf16.msra.mxu0 0
      %637 = vmatprep.subr.bf16.mxu0 0
      %638 = vmatpush1.bf16.msra.mxu0 0
      %639 = vmatprep.subr.bf16.mxu0 0
      %640 = vmatpush1.bf16.msra.mxu0 0
      %641 = vmatprep.subr.bf16.mxu0 0
      %642 = vmatpush1.bf16.msra.mxu0 0
      %643 = vmatprep.subr.bf16.mxu0 0
      %644 = vmatpush1.bf16.msra.mxu0 0
      %645 = vmatprep.subr.bf16.mxu0 0
      %646 = vmatpush1.bf16.msra.mxu0 0
      %647 = vmatprep.mubr.bf16.mxu0 0
      %648 = vmatmul.mubr.bf16.gmra.mrb[0].mxu0 %v601
      %v649 = vpop.f32.mrb[0].mxu0
      %v650 = vadd.f32 0.0, %v649
      %v651 = vpop.f32.mrb[0].mxu0
      %v652 = vadd.f32 0.0, %v651
      %v653 = vpop.f32.mrb[0].mxu0
      %v654 = vadd.f32 0.0, %v653
      %v655 = vpop.f32.mrb[0].mxu0
      %v656 = vadd.f32 0.0, %v655
      %657 = vmatprep.mubr.bf16.mxu0 0
      %658 = vmatmul.mubr.bf16.gmra.mrb[0].mxu0 %v604
      %v659 = vpop.f32.mrb[0].mxu0
      %v660 = vadd.f32 0.0, %v659
      %v661 = vpop.f32.mrb[0].mxu0
      %v662 = vadd.f32 0.0, %v661
      %v663 = vpop.f32.mrb[0].mxu0
      %v664 = vadd.f32 0.0, %v663
      %v665 = vpop.f32.mrb[0].mxu0
      %v666 = vadd.f32 0.0, %v665
      %667 = vdwg.mxu0
      %668 = vmatprep.subr.bf16.mxu0 0
      %669 = vmatpush1.bf16.msra.mxu0 %v613
      %670 = vmatprep.subr.bf16.mxu0 0
      %671 = vmatpush1.bf16.msra.mxu0 0
      %672 = vmatprep.subr.bf16.mxu0 0
      %673 = vmatpush1.bf16.msra.mxu0 0
      %674 = vmatprep.subr.bf16.mxu0 0
      %675 = vmatpush1.bf16.msra.mxu0 0
      %676 = vmatprep.subr.bf16.mxu0 0
      %677 = vmatpush1.bf16.msra.mxu0 0
      %678 = vmatprep.subr.bf16.mxu0 0
      %679 = vmatpush1.bf16.msra.mxu0 0
      %680 = vmatprep.subr.bf16.mxu0 0
      %681 = vmatpush1.bf16.msra.mxu0 0
      %682 = vmatprep.subr.bf16.mxu0 0
      %683 = vmatpush1.bf16.msra.mxu0 0
      %684 = vmatprep.subr.bf16.mxu0 0
      %685 = vmatpush1.bf16.msra.mxu0 0
      %686 = vmatprep.subr.bf16.mxu0 0
      %687 = vmatpush1.bf16.msra.mxu0 0
      %688 = vmatprep.subr.bf16.mxu0 0
      %689 = vmatpush1.bf16.msra.mxu0 0
      %690 = vmatprep.subr.bf16.mxu0 0
      %691 = vmatpush1.bf16.msra.mxu0 0
      %692 = vmatprep.subr.bf16.mxu0 0
      %693 = vmatpush1.bf16.msra.mxu0 0
      %694 = vmatprep.subr.bf16.mxu0 0
      %695 = vmatpush1.bf16.msra.mxu0 0
      %696 = vmatprep.subr.bf16.mxu0 0
      %697 = vmatpush1.bf16.msra.mxu0 0
      %698 = vmatprep.subr.bf16.mxu0 0
      %699 = vmatpush1.bf16.msra.mxu0 0
      %700 = vmatprep.mubr.bf16.mxu0 0
      %701 = vmatmul.mubr.bf16.gmra.mrb[0].mxu0 %v601
      %v702 = vpop.f32.mrb[0].mxu0
      %v703 = vadd.f32 0.0, %v702
      %v704 = vpop.f32.mrb[0].mxu0
      %v705 = vpop.f32.mrb[0].mxu0
      %v706 = vadd.f32 0.0, %v705
      %v707 = vpop.f32.mrb[0].mxu0
      %708 = vmatprep.mubr.bf16.mxu0 0
      %709 = vmatmul.mubr.bf16.gmra.mrb[0].mxu0 %v604
      %v710 = vpop.f32.mrb[0].mxu0
      %v711 = vadd.f32 0.0, %v710
      %v712 = vpop.f32.mrb[0].mxu0
      %v713 = vpop.f32.mrb[0].mxu0
      %v714 = vadd.f32 0.0, %v713
      %v715 = vpop.f32.mrb[0].mxu0
      %716 = vdwg.mxu0
      %v717 = vadd.f32 %v514, %v650
      %v718 = vadd.f32 %v516, %v652
      %v719 = vadd.f32 %v567, %v703
      %v720 = vadd.f32 %v518, %v654
      %v721 = vadd.f32 %v520, %v656
      %v722 = vadd.f32 %v570, %v706
      %v723 = vadd.f32 %v524, %v660
      %v724 = vadd.f32 %v526, %v662
      %v725 = vadd.f32 %v575, %v711
      %v726 = vadd.f32 %v528, %v664
      %v727 = vadd.f32 %v530, %v666
      %v728 = vadd.f32 %v578, %v714
      %v733 = vunpack.c.l.b16 %v275
      %v734 = vunpack.c.l.b16 %v276
      %v735 = vunpack.c.l.b16 %v277
      %v736 = vunpack.c.l.b16 %v278
      %v737 = vpack.c.b16 %v734, %v733
      %v738 = vpack.c.b16 %v736, %v735
      %739 = vrot.lane.b32.xlu0 %v323, 110
      %v740 = vpop.permute.xlu0 %739
      %741 = vrot.lane.b32.xlu0 %v324, 110
      %v742 = vpop.permute.xlu0 %741
      %743 = vrot.lane.b32.xlu0 %v325, 110
      %v744 = vpop.permute.xlu0 %743
      %vm745 = vcmask 900096
      %v746 = vsel %vm745, %v740, %v742
      %v747 = vsel %vm745, %v742, %v744
      %v749 = vsel %vm335, %v737, 0
      %v752 = vsel %vm335, %v738, 0
      %v755 = vsel %vm342, %v746, 0
      %v758 = vsel %vm342, %v747, 0
      %v761 = vsel %vm342, %v744, 0
      %763 = vmatprep.subr.bf16.mxu0 %v758
      %764 = vmatpush1.bf16.msra.mxu0 %v755
      %765 = vmatprep.subr.bf16.mxu0 0
      %766 = vmatpush1.bf16.msra.mxu0 0
      %767 = vmatprep.subr.bf16.mxu0 0
      %768 = vmatpush1.bf16.msra.mxu0 0
      %769 = vmatprep.subr.bf16.mxu0 0
      %770 = vmatpush1.bf16.msra.mxu0 0
      %771 = vmatprep.subr.bf16.mxu0 0
      %772 = vmatpush1.bf16.msra.mxu0 0
      %773 = vmatprep.subr.bf16.mxu0 0
      %774 = vmatpush1.bf16.msra.mxu0 0
      %775 = vmatprep.subr.bf16.mxu0 0
      %776 = vmatpush1.bf16.msra.mxu0 0
      %777 = vmatprep.subr.bf16.mxu0 0
      %778 = vmatpush1.bf16.msra.mxu0 0
      %779 = vmatprep.subr.bf16.mxu0 0
      %780 = vmatpush1.bf16.msra.mxu0 0
      %781 = vmatprep.subr.bf16.mxu0 0
      %782 = vmatpush1.bf16.msra.mxu0 0
      %783 = vmatprep.subr.bf16.mxu0 0
      %784 = vmatpush1.bf16.msra.mxu0 0
      %785 = vmatprep.subr.bf16.mxu0 0
      %786 = vmatpush1.bf16.msra.mxu0 0
      %787 = vmatprep.subr.bf16.mxu0 0
      %788 = vmatpush1.bf16.msra.mxu0 0
      %789 = vmatprep.subr.bf16.mxu0 0
      %790 = vmatpush1.bf16.msra.mxu0 0
      %791 = vmatprep.subr.bf16.mxu0 0
      %792 = vmatpush1.bf16.msra.mxu0 0
      %793 = vmatprep.subr.bf16.mxu0 0
      %794 = vmatpush1.bf16.msra.mxu0 0
      %795 = vmatprep.mubr.bf16.mxu0 0
      %796 = vmatmul.mubr.bf16.gmra.mrb[0].mxu0 %v749
      %v797 = vpop.f32.mrb[0].mxu0
      %v798 = vadd.f32 0.0, %v797
      %v799 = vpop.f32.mrb[0].mxu0
      %v800 = vadd.f32 0.0, %v799
      %v801 = vpop.f32.mrb[0].mxu0
      %v802 = vadd.f32 0.0, %v801
      %v803 = vpop.f32.mrb[0].mxu0
      %v804 = vadd.f32 0.0, %v803
      %805 = vmatprep.mubr.bf16.mxu0 0
      %806 = vmatmul.mubr.bf16.gmra.mrb[0].mxu0 %v752
      %v807 = vpop.f32.mrb[0].mxu0
      %v808 = vadd.f32 0.0, %v807
      %v809 = vpop.f32.mrb[0].mxu0
      %v810 = vadd.f32 0.0, %v809
      %v811 = vpop.f32.mrb[0].mxu0
      %v812 = vadd.f32 0.0, %v811
      %v813 = vpop.f32.mrb[0].mxu0
      %v814 = vadd.f32 0.0, %v813
      %815 = vdwg.mxu0
      %816 = vmatprep.subr.bf16.mxu0 0
      %817 = vmatpush1.bf16.msra.mxu0 %v761
      %818 = vmatprep.subr.bf16.mxu0 0
      %819 = vmatpush1.bf16.msra.mxu0 0
      %820 = vmatprep.subr.bf16.mxu0 0
      %821 = vmatpush1.bf16.msra.mxu0 0
      %822 = vmatprep.subr.bf16.mxu0 0
      %823 = vmatpush1.bf16.msra.mxu0 0
      %824 = vmatprep.subr.bf16.mxu0 0
      %825 = vmatpush1.bf16.msra.mxu0 0
      %826 = vmatprep.subr.bf16.mxu0 0
      %827 = vmatpush1.bf16.msra.mxu0 0
      %828 = vmatprep.subr.bf16.mxu0 0
      %829 = vmatpush1.bf16.msra.mxu0 0
      %830 = vmatprep.subr.bf16.mxu0 0
      %831 = vmatpush1.bf16.msra.mxu0 0
      %832 = vmatprep.subr.bf16.mxu0 0
      %833 = vmatpush1.bf16.msra.mxu0 0
      %834 = vmatprep.subr.bf16.mxu0 0
      %835 = vmatpush1.bf16.msra.mxu0 0
      %836 = vmatprep.subr.bf16.mxu0 0
      %837 = vmatpush1.bf16.msra.mxu0 0
      %838 = vmatprep.subr.bf16.mxu0 0
      %839 = vmatpush1.bf16.msra.mxu0 0
      %840 = vmatprep.subr.bf16.mxu0 0
      %841 = vmatpush1.bf16.msra.mxu0 0
      %842 = vmatprep.subr.bf16.mxu0 0
      %843 = vmatpush1.bf16.msra.mxu0 0
      %844 = vmatprep.subr.bf16.mxu0 0
      %845 = vmatpush1.bf16.msra.mxu0 0
      %846 = vmatprep.subr.bf16.mxu0 0
      %847 = vmatpush1.bf16.msra.mxu0 0
      %848 = vmatprep.mubr.bf16.mxu0 0
      %849 = vmatmul.mubr.bf16.gmra.mrb[0].mxu0 %v749
      %v850 = vpop.f32.mrb[0].mxu0
      %v851 = vadd.f32 0.0, %v850
      %v852 = vpop.f32.mrb[0].mxu0
      %v853 = vpop.f32.mrb[0].mxu0
      %v854 = vadd.f32 0.0, %v853
      %v855 = vpop.f32.mrb[0].mxu0
      %856 = vmatprep.mubr.bf16.mxu0 0
      %857 = vmatmul.mubr.bf16.gmra.mrb[0].mxu0 %v752
      %v858 = vpop.f32.mrb[0].mxu0
      %v859 = vadd.f32 0.0, %v858
      %v860 = vpop.f32.mrb[0].mxu0
      %v861 = vpop.f32.mrb[0].mxu0
      %v862 = vadd.f32 0.0, %v861
      %v863 = vpop.f32.mrb[0].mxu0
      %864 = vdwg.mxu0
      %v865 = vadd.f32 %v717, %v798
      %v866 = vadd.f32 %v718, %v800
      %v867 = vadd.f32 %v719, %v851
      %v868 = vadd.f32 %v720, %v802
      %v869 = vadd.f32 %v721, %v804
      %v870 = vadd.f32 %v722, %v854
      %v871 = vadd.f32 %v723, %v808
      %v872 = vadd.f32 %v724, %v810
      %v873 = vadd.f32 %v725, %v859
      %v874 = vadd.f32 %v726, %v812
      %v875 = vadd.f32 %v727, %v814
      %v876 = vadd.f32 %v728, %v862
      %v881 = vunpack.c.l.b16 %v279
      %v882 = vunpack.c.l.b16 %v280
      %v883 = vunpack.c.l.b16 %v281
      %v884 = vunpack.c.l.b16 %v282
      %v885 = vpack.c.b16 %v882, %v881
      %v886 = vpack.c.b16 %v884, %v883
      %887 = vrot.lane.b32.xlu0 %v323, 109
      %v888 = vpop.permute.xlu0 %887
      %889 = vrot.lane.b32.xlu0 %v324, 109
      %v890 = vpop.permute.xlu0 %889
      %891 = vrot.lane.b32.xlu0 %v325, 109
      %v892 = vpop.permute.xlu0 %891
      %vm893 = vcmask 891904
      %v894 = vsel %vm893, %v888, %v890
      %v895 = vsel %vm893, %v890, %v892
      %v897 = vsel %vm335, %v885, 0
      %v900 = vsel %vm335, %v886, 0
      %v903 = vsel %vm342, %v894, 0
      %v906 = vsel %vm342, %v895, 0
      %v909 = vsel %vm342, %v892, 0
      %911 = vmatprep.subr.bf16.mxu0 %v906
      %912 = vmatpush1.bf16.msra.mxu0 %v903
      %913 = vmatprep.subr.bf16.mxu0 0
      %914 = vmatpush1.bf16.msra.mxu0 0
      %915 = vmatprep.subr.bf16.mxu0 0
      %916 = vmatpush1.bf16.msra.mxu0 0
      %917 = vmatprep.subr.bf16.mxu0 0
      %918 = vmatpush1.bf16.msra.mxu0 0
      %919 = vmatprep.subr.bf16.mxu0 0
      %920 = vmatpush1.bf16.msra.mxu0 0
      %921 = vmatprep.subr.bf16.mxu0 0
      %922 = vmatpush1.bf16.msra.mxu0 0
      %923 = vmatprep.subr.bf16.mxu0 0
      %924 = vmatpush1.bf16.msra.mxu0 0
      %925 = vmatprep.subr.bf16.mxu0 0
      %926 = vmatpush1.bf16.msra.mxu0 0
      %927 = vmatprep.subr.bf16.mxu0 0
      %928 = vmatpush1.bf16.msra.mxu0 0
      %929 = vmatprep.subr.bf16.mxu0 0
      %930 = vmatpush1.bf16.msra.mxu0 0
      %931 = vmatprep.subr.bf16.mxu0 0
      %932 = vmatpush1.bf16.msra.mxu0 0
      %933 = vmatprep.subr.bf16.mxu0 0
      %934 = vmatpush1.bf16.msra.mxu0 0
      %935 = vmatprep.subr.bf16.mxu0 0
      %936 = vmatpush1.bf16.msra.mxu0 0
      %937 = vmatprep.subr.bf16.mxu0 0
      %938 = vmatpush1.bf16.msra.mxu0 0
      %939 = vmatprep.subr.bf16.mxu0 0
      %940 = vmatpush1.bf16.msra.mxu0 0
      %941 = vmatprep.subr.bf16.mxu0 0
      %942 = vmatpush1.bf16.msra.mxu0 0
      %943 = vmatprep.mubr.bf16.mxu0 0
      %944 = vmatmul.mubr.bf16.gmra.mrb[0].mxu0 %v897
      %v945 = vpop.f32.mrb[0].mxu0
      %v946 = vadd.f32 0.0, %v945
      %v947 = vpop.f32.mrb[0].mxu0
      %v948 = vadd.f32 0.0, %v947
      %v949 = vpop.f32.mrb[0].mxu0
      %v950 = vadd.f32 0.0, %v949
      %v951 = vpop.f32.mrb[0].mxu0
      %v952 = vadd.f32 0.0, %v951
      %953 = vmatprep.mubr.bf16.mxu0 0
      %954 = vmatmul.mubr.bf16.gmra.mrb[0].mxu0 %v900
      %v955 = vpop.f32.mrb[0].mxu0
      %v956 = vadd.f32 0.0, %v955
      %v957 = vpop.f32.mrb[0].mxu0
      %v958 = vadd.f32 0.0, %v957
      %v959 = vpop.f32.mrb[0].mxu0
      %v960 = vadd.f32 0.0, %v959
      %v961 = vpop.f32.mrb[0].mxu0
      %v962 = vadd.f32 0.0, %v961
      %963 = vdwg.mxu0
      %964 = vmatprep.subr.bf16.mxu0 0
      %965 = vmatpush1.bf16.msra.mxu0 %v909
      %966 = vmatprep.subr.bf16.mxu0 0
      %967 = vmatpush1.bf16.msra.mxu0 0
      %968 = vmatprep.subr.bf16.mxu0 0
      %969 = vmatpush1.bf16.msra.mxu0 0
      %970 = vmatprep.subr.bf16.mxu0 0
      %971 = vmatpush1.bf16.msra.mxu0 0
      %972 = vmatprep.subr.bf16.mxu0 0
      %973 = vmatpush1.bf16.msra.mxu0 0
      %974 = vmatprep.subr.bf16.mxu0 0
      %975 = vmatpush1.bf16.msra.mxu0 0
      %976 = vmatprep.subr.bf16.mxu0 0
      %977 = vmatpush1.bf16.msra.mxu0 0
      %978 = vmatprep.subr.bf16.mxu0 0
      %979 = vmatpush1.bf16.msra.mxu0 0
      %980 = vmatprep.subr.bf16.mxu0 0
      %981 = vmatpush1.bf16.msra.mxu0 0
      %982 = vmatprep.subr.bf16.mxu0 0
      %983 = vmatpush1.bf16.msra.mxu0 0
      %984 = vmatprep.subr.bf16.mxu0 0
      %985 = vmatpush1.bf16.msra.mxu0 0
      %986 = vmatprep.subr.bf16.mxu0 0
      %987 = vmatpush1.bf16.msra.mxu0 0
      %988 = vmatprep.subr.bf16.mxu0 0
      %989 = vmatpush1.bf16.msra.mxu0 0
      %990 = vmatprep.subr.bf16.mxu0 0
      %991 = vmatpush1.bf16.msra.mxu0 0
      %992 = vmatprep.subr.bf16.mxu0 0
      %993 = vmatpush1.bf16.msra.mxu0 0
      %994 = vmatprep.subr.bf16.mxu0 0
      %995 = vmatpush1.bf16.msra.mxu0 0
      %996 = vmatprep.mubr.bf16.mxu0 0
      %997 = vmatmul.mubr.bf16.gmra.mrb[0].mxu0 %v897
      %v998 = vpop.f32.mrb[0].mxu0
      %v999 = vadd.f32 0.0, %v998
      %v1000 = vpop.f32.mrb[0].mxu0
      %v1001 = vpop.f32.mrb[0].mxu0
      %v1002 = vadd.f32 0.0, %v1001
      %v1003 = vpop.f32.mrb[0].mxu0
      %1004 = vmatprep.mubr.bf16.mxu0 0
      %1005 = vmatmul.mubr.bf16.gmra.mrb[0].mxu0 %v900
      %v1006 = vpop.f32.mrb[0].mxu0
      %v1007 = vadd.f32 0.0, %v1006
      %v1008 = vpop.f32.mrb[0].mxu0
      %v1009 = vpop.f32.mrb[0].mxu0
      %v1010 = vadd.f32 0.0, %v1009
      %v1011 = vpop.f32.mrb[0].mxu0
      %1012 = vdwg.mxu0
      %v1013 = vadd.f32 %v865, %v946
      %v1014 = vadd.f32 %v866, %v948
      %v1015 = vadd.f32 %v867, %v999
      %v1016 = vadd.f32 %v868, %v950
      %v1017 = vadd.f32 %v869, %v952
      %v1018 = vadd.f32 %v870, %v1002
      %v1019 = vadd.f32 %v871, %v956
      %v1020 = vadd.f32 %v872, %v958
      %v1021 = vadd.f32 %v873, %v1007
      %v1022 = vadd.f32 %v874, %v960
      %v1023 = vadd.f32 %v875, %v962
      %v1024 = vadd.f32 %v876, %v1010
      %v1029 = vunpack.c.l.b16 %v283
      %v1030 = vunpack.c.l.b16 %v284
      %v1031 = vunpack.c.l.b16 %v285
      %v1032 = vunpack.c.l.b16 %v286
      %v1033 = vpack.c.b16 %v1030, %v1029
      %v1034 = vpack.c.b16 %v1032, %v1031
      %1035 = vrot.lane.b32.xlu0 %v323, 108
      %v1036 = vpop.permute.xlu0 %1035
      %1037 = vrot.lane.b32.xlu0 %v324, 108
      %v1038 = vpop.permute.xlu0 %1037
      %1039 = vrot.lane.b32.xlu0 %v325, 108
      %v1040 = vpop.permute.xlu0 %1039
      %vm1041 = vcmask 883712
      %v1042 = vsel %vm1041, %v1036, %v1038
      %v1043 = vsel %vm1041, %v1038, %v1040
      %v1045 = vsel %vm335, %v1033, 0
      %v1048 = vsel %vm335, %v1034, 0
      %v1051 = vsel %vm342, %v1042, 0
      %v1054 = vsel %vm342, %v1043, 0
      %v1057 = vsel %vm342, %v1040, 0
      %1059 = vmatprep.subr.bf16.mxu0 %v1054
      %1060 = vmatpush1.bf16.msra.mxu0 %v1051
      %1061 = vmatprep.subr.bf16.mxu0 0
      %1062 = vmatpush1.bf16.msra.mxu0 0
      %1063 = vmatprep.subr.bf16.mxu0 0
      %1064 = vmatpush1.bf16.msra.mxu0 0
      %1065 = vmatprep.subr.bf16.mxu0 0
      %1066 = vmatpush1.bf16.msra.mxu0 0
      %1067 = vmatprep.subr.bf16.mxu0 0
      %1068 = vmatpush1.bf16.msra.mxu0 0
      %1069 = vmatprep.subr.bf16.mxu0 0
      %1070 = vmatpush1.bf16.msra.mxu0 0
      %1071 = vmatprep.subr.bf16.mxu0 0
      %1072 = vmatpush1.bf16.msra.mxu0 0
      %1073 = vmatprep.subr.bf16.mxu0 0
      %1074 = vmatpush1.bf16.msra.mxu0 0
      %1075 = vmatprep.subr.bf16.mxu0 0
      %1076 = vmatpush1.bf16.msra.mxu0 0
      %1077 = vmatprep.subr.bf16.mxu0 0
      %1078 = vmatpush1.bf16.msra.mxu0 0
      %1079 = vmatprep.subr.bf16.mxu0 0
      %1080 = vmatpush1.bf16.msra.mxu0 0
      %1081 = vmatprep.subr.bf16.mxu0 0
      %1082 = vmatpush1.bf16.msra.mxu0 0
      %1083 = vmatprep.subr.bf16.mxu0 0
      %1084 = vmatpush1.bf16.msra.mxu0 0
      %1085 = vmatprep.subr.bf16.mxu0 0
      %1086 = vmatpush1.bf16.msra.mxu0 0
      %1087 = vmatprep.subr.bf16.mxu0 0
      %1088 = vmatpush1.bf16.msra.mxu0 0
      %1089 = vmatprep.subr.bf16.mxu0 0
      %1090 = vmatpush1.bf16.msra.mxu0 0
      %1091 = vmatprep.mubr.bf16.mxu0 0
      %1092 = vmatmul.mubr.bf16.gmra.mrb[0].mxu0 %v1045
      %v1093 = vpop.f32.mrb[0].mxu0
      %v1094 = vadd.f32 0.0, %v1093
      %v1095 = vpop.f32.mrb[0].mxu0
      %v1096 = vadd.f32 0.0, %v1095
      %v1097 = vpop.f32.mrb[0].mxu0
      %v1098 = vadd.f32 0.0, %v1097
      %v1099 = vpop.f32.mrb[0].mxu0
      %v1100 = vadd.f32 0.0, %v1099
      %1101 = vmatprep.mubr.bf16.mxu0 0
      %1102 = vmatmul.mubr.bf16.gmra.mrb[0].mxu0 %v1048
      %v1103 = vpop.f32.mrb[0].mxu0
      %v1104 = vadd.f32 0.0, %v1103
      %v1105 = vpop.f32.mrb[0].mxu0
      %v1106 = vadd.f32 0.0, %v1105
      %v1107 = vpop.f32.mrb[0].mxu0
      %v1108 = vadd.f32 0.0, %v1107
      %v1109 = vpop.f32.mrb[0].mxu0
      %v1110 = vadd.f32 0.0, %v1109
      %1111 = vdwg.mxu0
      %1112 = vmatprep.subr.bf16.mxu0 0
      %1113 = vmatpush1.bf16.msra.mxu0 %v1057
      %1114 = vmatprep.subr.bf16.mxu0 0
      %1115 = vmatpush1.bf16.msra.mxu0 0
      %1116 = vmatprep.subr.bf16.mxu0 0
      %1117 = vmatpush1.bf16.msra.mxu0 0
      %1118 = vmatprep.subr.bf16.mxu0 0
      %1119 = vmatpush1.bf16.msra.mxu0 0
      %1120 = vmatprep.subr.bf16.mxu0 0
      %1121 = vmatpush1.bf16.msra.mxu0 0
      %1122 = vmatprep.subr.bf16.mxu0 0
      %1123 = vmatpush1.bf16.msra.mxu0 0
      %1124 = vmatprep.subr.bf16.mxu0 0
      %1125 = vmatpush1.bf16.msra.mxu0 0
      %1126 = vmatprep.subr.bf16.mxu0 0
      %1127 = vmatpush1.bf16.msra.mxu0 0
      %1128 = vmatprep.subr.bf16.mxu0 0
      %1129 = vmatpush1.bf16.msra.mxu0 0
      %1130 = vmatprep.subr.bf16.mxu0 0
      %1131 = vmatpush1.bf16.msra.mxu0 0
      %1132 = vmatprep.subr.bf16.mxu0 0
      %1133 = vmatpush1.bf16.msra.mxu0 0
      %1134 = vmatprep.subr.bf16.mxu0 0
      %1135 = vmatpush1.bf16.msra.mxu0 0
      %1136 = vmatprep.subr.bf16.mxu0 0
      %1137 = vmatpush1.bf16.msra.mxu0 0
      %1138 = vmatprep.subr.bf16.mxu0 0
      %1139 = vmatpush1.bf16.msra.mxu0 0
      %1140 = vmatprep.subr.bf16.mxu0 0
      %1141 = vmatpush1.bf16.msra.mxu0 0
      %1142 = vmatprep.subr.bf16.mxu0 0
      %1143 = vmatpush1.bf16.msra.mxu0 0
      %1144 = vmatprep.mubr.bf16.mxu0 0
      %1145 = vmatmul.mubr.bf16.gmra.mrb[0].mxu0 %v1045
      %v1146 = vpop.f32.mrb[0].mxu0
      %v1147 = vadd.f32 0.0, %v1146
      %v1148 = vpop.f32.mrb[0].mxu0
      %v1149 = vpop.f32.mrb[0].mxu0
      %v1150 = vadd.f32 0.0, %v1149
      %v1151 = vpop.f32.mrb[0].mxu0
      %1152 = vmatprep.mubr.bf16.mxu0 0
      %1153 = vmatmul.mubr.bf16.gmra.mrb[0].mxu0 %v1048
      %v1154 = vpop.f32.mrb[0].mxu0
      %v1155 = vadd.f32 0.0, %v1154
      %v1156 = vpop.f32.mrb[0].mxu0
      %v1157 = vpop.f32.mrb[0].mxu0
      %v1158 = vadd.f32 0.0, %v1157
      %v1159 = vpop.f32.mrb[0].mxu0
      %1160 = vdwg.mxu0
      %v1161 = vadd.f32 %v1013, %v1094
      %v1162 = vadd.f32 %v1014, %v1096
      %v1163 = vadd.f32 %v1015, %v1147
      %v1164 = vadd.f32 %v1016, %v1098
      %v1165 = vadd.f32 %v1017, %v1100
      %v1166 = vadd.f32 %v1018, %v1150
      %v1167 = vadd.f32 %v1019, %v1104
      %v1168 = vadd.f32 %v1020, %v1106
      %v1169 = vadd.f32 %v1021, %v1155
      %v1170 = vadd.f32 %v1022, %v1108
      %v1171 = vadd.f32 %v1023, %v1110
      %v1172 = vadd.f32 %v1024, %v1158
      %v1177 = vunpack.c.l.b16 %v287
      %v1178 = vunpack.c.l.b16 %v288
      %v1179 = vunpack.c.l.b16 %v289
      %v1180 = vunpack.c.l.b16 %v290
      %v1181 = vpack.c.b16 %v1178, %v1177
      %v1182 = vpack.c.b16 %v1180, %v1179
      %1183 = vrot.lane.b32.xlu0 %v323, 92
      %v1184 = vpop.permute.xlu0 %1183
      %1185 = vrot.lane.b32.xlu0 %v324, 92
      %v1186 = vpop.permute.xlu0 %1185
      %1187 = vrot.lane.b32.xlu0 %v325, 92
      %v1188 = vpop.permute.xlu0 %1187
      %vm1189 = vcmask 752640
      %v1190 = vsel %vm1189, %v1184, %v1186
      %v1191 = vsel %vm1189, %v1186, %v1188
      %v1193 = vsel %vm335, %v1181, 0
      %v1196 = vsel %vm335, %v1182, 0
      %v1199 = vsel %vm342, %v1190, 0
      %v1202 = vsel %vm342, %v1191, 0
      %v1205 = vsel %vm342, %v1188, 0
      %1207 = vmatprep.subr.bf16.mxu0 %v1202
      %1208 = vmatpush1.bf16.msra.mxu0 %v1199
      %1209 = vmatprep.subr.bf16.mxu0 0
      %1210 = vmatpush1.bf16.msra.mxu0 0
      %1211 = vmatprep.subr.bf16.mxu0 0
      %1212 = vmatpush1.bf16.msra.mxu0 0
      %1213 = vmatprep.subr.bf16.mxu0 0
      %1214 = vmatpush1.bf16.msra.mxu0 0
      %1215 = vmatprep.subr.bf16.mxu0 0
      %1216 = vmatpush1.bf16.msra.mxu0 0
      %1217 = vmatprep.subr.bf16.mxu0 0
      %1218 = vmatpush1.bf16.msra.mxu0 0
      %1219 = vmatprep.subr.bf16.mxu0 0
      %1220 = vmatpush1.bf16.msra.mxu0 0
      %1221 = vmatprep.subr.bf16.mxu0 0
      %1222 = vmatpush1.bf16.msra.mxu0 0
      %1223 = vmatprep.subr.bf16.mxu0 0
      %1224 = vmatpush1.bf16.msra.mxu0 0
      %1225 = vmatprep.subr.bf16.mxu0 0
      %1226 = vmatpush1.bf16.msra.mxu0 0
      %1227 = vmatprep.subr.bf16.mxu0 0
      %1228 = vmatpush1.bf16.msra.mxu0 0
      %1229 = vmatprep.subr.bf16.mxu0 0
      %1230 = vmatpush1.bf16.msra.mxu0 0
      %1231 = vmatprep.subr.bf16.mxu0 0
      %1232 = vmatpush1.bf16.msra.mxu0 0
      %1233 = vmatprep.subr.bf16.mxu0 0
      %1234 = vmatpush1.bf16.msra.mxu0 0
      %1235 = vmatprep.subr.bf16.mxu0 0
      %1236 = vmatpush1.bf16.msra.mxu0 0
      %1237 = vmatprep.subr.bf16.mxu0 0
      %1238 = vmatpush1.bf16.msra.mxu0 0
      %1239 = vmatprep.mubr.bf16.mxu0 0
      %1240 = vmatmul.mubr.bf16.gmra.mrb[0].mxu0 %v1193
      %v1241 = vpop.f32.mrb[0].mxu0
      %v1242 = vadd.f32 0.0, %v1241
      %v1243 = vpop.f32.mrb[0].mxu0
      %v1244 = vadd.f32 0.0, %v1243
      %v1245 = vpop.f32.mrb[0].mxu0
      %v1246 = vadd.f32 0.0, %v1245
      %v1247 = vpop.f32.mrb[0].mxu0
      %v1248 = vadd.f32 0.0, %v1247
      %1249 = vmatprep.mubr.bf16.mxu0 0
      %1250 = vmatmul.mubr.bf16.gmra.mrb[0].mxu0 %v1196
      %v1251 = vpop.f32.mrb[0].mxu0
      %v1252 = vadd.f32 0.0, %v1251
      %v1253 = vpop.f32.mrb[0].mxu0
      %v1254 = vadd.f32 0.0, %v1253
      %v1255 = vpop.f32.mrb[0].mxu0
      %v1256 = vadd.f32 0.0, %v1255
      %v1257 = vpop.f32.mrb[0].mxu0
      %v1258 = vadd.f32 0.0, %v1257
      %1259 = vdwg.mxu0
      %1260 = vmatprep.subr.bf16.mxu0 0
      %1261 = vmatpush1.bf16.msra.mxu0 %v1205
      %1262 = vmatprep.subr.bf16.mxu0 0
      %1263 = vmatpush1.bf16.msra.mxu0 0
      %1264 = vmatprep.subr.bf16.mxu0 0
      %1265 = vmatpush1.bf16.msra.mxu0 0
      %1266 = vmatprep.subr.bf16.mxu0 0
      %1267 = vmatpush1.bf16.msra.mxu0 0
      %1268 = vmatprep.subr.bf16.mxu0 0
      %1269 = vmatpush1.bf16.msra.mxu0 0
      %1270 = vmatprep.subr.bf16.mxu0 0
      %1271 = vmatpush1.bf16.msra.mxu0 0
      %1272 = vmatprep.subr.bf16.mxu0 0
      %1273 = vmatpush1.bf16.msra.mxu0 0
      %1274 = vmatprep.subr.bf16.mxu0 0
      %1275 = vmatpush1.bf16.msra.mxu0 0
      %1276 = vmatprep.subr.bf16.mxu0 0
      %1277 = vmatpush1.bf16.msra.mxu0 0
      %1278 = vmatprep.subr.bf16.mxu0 0
      %1279 = vmatpush1.bf16.msra.mxu0 0
      %1280 = vmatprep.subr.bf16.mxu0 0
      %1281 = vmatpush1.bf16.msra.mxu0 0
      %1282 = vmatprep.subr.bf16.mxu0 0
      %1283 = vmatpush1.bf16.msra.mxu0 0
      %1284 = vmatprep.subr.bf16.mxu0 0
      %1285 = vmatpush1.bf16.msra.mxu0 0
      %1286 = vmatprep.subr.bf16.mxu0 0
      %1287 = vmatpush1.bf16.msra.mxu0 0
      %1288 = vmatprep.subr.bf16.mxu0 0
      %1289 = vmatpush1.bf16.msra.mxu0 0
      %1290 = vmatprep.subr.bf16.mxu0 0
      %1291 = vmatpush1.bf16.msra.mxu0 0
      %1292 = vmatprep.mubr.bf16.mxu0 0
      %1293 = vmatmul.mubr.bf16.gmra.mrb[0].mxu0 %v1193
      %v1294 = vpop.f32.mrb[0].mxu0
      %v1295 = vadd.f32 0.0, %v1294
      %v1296 = vpop.f32.mrb[0].mxu0
      %v1297 = vpop.f32.mrb[0].mxu0
      %v1298 = vadd.f32 0.0, %v1297
      %v1299 = vpop.f32.mrb[0].mxu0
      %1300 = vmatprep.mubr.bf16.mxu0 0
      %1301 = vmatmul.mubr.bf16.gmra.mrb[0].mxu0 %v1196
      %v1302 = vpop.f32.mrb[0].mxu0
      %v1303 = vadd.f32 0.0, %v1302
      %v1304 = vpop.f32.mrb[0].mxu0
      %v1305 = vpop.f32.mrb[0].mxu0
      %v1306 = vadd.f32 0.0, %v1305
      %v1307 = vpop.f32.mrb[0].mxu0
      %1308 = vdwg.mxu0
      %v1309 = vadd.f32 %v1161, %v1242
      %v1310 = vadd.f32 %v1162, %v1244
      %v1311 = vadd.f32 %v1163, %v1295
      %v1312 = vadd.f32 %v1164, %v1246
      %v1313 = vadd.f32 %v1165, %v1248
      %v1314 = vadd.f32 %v1166, %v1298
      %v1315 = vadd.f32 %v1167, %v1252
      %v1316 = vadd.f32 %v1168, %v1254
      %v1317 = vadd.f32 %v1169, %v1303
      %v1318 = vadd.f32 %v1170, %v1256
      %v1319 = vadd.f32 %v1171, %v1258
      %v1320 = vadd.f32 %v1172, %v1306
      %v1325 = vunpack.c.l.b16 %v291
      %v1326 = vunpack.c.l.b16 %v292
      %v1327 = vunpack.c.l.b16 %v293
      %v1328 = vunpack.c.l.b16 %v294
      %v1329 = vpack.c.b16 %v1326, %v1325
      %v1330 = vpack.c.b16 %v1328, %v1327
      %1331 = vrot.lane.b32.xlu0 %v323, 91
      %v1332 = vpop.permute.xlu0 %1331
      %1333 = vrot.lane.b32.xlu0 %v324, 91
      %v1334 = vpop.permute.xlu0 %1333
      %1335 = vrot.lane.b32.xlu0 %v325, 91
      %v1336 = vpop.permute.xlu0 %1335
      %vm1337 = vcmask 744448
      %v1338 = vsel %vm1337, %v1332, %v1334
      %v1339 = vsel %vm1337, %v1334, %v1336
      %v1341 = vsel %vm335, %v1329, 0
      %v1344 = vsel %vm335, %v1330, 0
      %v1347 = vsel %vm342, %v1338, 0
      %v1350 = vsel %vm342, %v1339, 0
      %v1353 = vsel %vm342, %v1336, 0
      %1355 = vmatprep.subr.bf16.mxu0 %v1350
      %1356 = vmatpush1.bf16.msra.mxu0 %v1347
      %1357 = vmatprep.subr.bf16.mxu0 0
      %1358 = vmatpush1.bf16.msra.mxu0 0
      %1359 = vmatprep.subr.bf16.mxu0 0
      %1360 = vmatpush1.bf16.msra.mxu0 0
      %1361 = vmatprep.subr.bf16.mxu0 0
      %1362 = vmatpush1.bf16.msra.mxu0 0
      %1363 = vmatprep.subr.bf16.mxu0 0
      %1364 = vmatpush1.bf16.msra.mxu0 0
      %1365 = vmatprep.subr.bf16.mxu0 0
      %1366 = vmatpush1.bf16.msra.mxu0 0
      %1367 = vmatprep.subr.bf16.mxu0 0
      %1368 = vmatpush1.bf16.msra.mxu0 0
      %1369 = vmatprep.subr.bf16.mxu0 0
      %1370 = vmatpush1.bf16.msra.mxu0 0
      %1371 = vmatprep.subr.bf16.mxu0 0
      %1372 = vmatpush1.bf16.msra.mxu0 0
      %1373 = vmatprep.subr.bf16.mxu0 0
      %1374 = vmatpush1.bf16.msra.mxu0 0
      %1375 = vmatprep.subr.bf16.mxu0 0
      %1376 = vmatpush1.bf16.msra.mxu0 0
      %1377 = vmatprep.subr.bf16.mxu0 0
      %1378 = vmatpush1.bf16.msra.mxu0 0
      %1379 = vmatprep.subr.bf16.mxu0 0
      %1380 = vmatpush1.bf16.msra.mxu0 0
      %1381 = vmatprep.subr.bf16.mxu0 0
      %1382 = vmatpush1.bf16.msra.mxu0 0
      %1383 = vmatprep.subr.bf16.mxu0 0
      %1384 = vmatpush1.bf16.msra.mxu0 0
      %1385 = vmatprep.subr.bf16.mxu0 0
      %1386 = vmatpush1.bf16.msra.mxu0 0
      %1387 = vmatprep.mubr.bf16.mxu0 0
      %1388 = vmatmul.mubr.bf16.gmra.mrb[0].mxu0 %v1341
      %v1389 = vpop.f32.mrb[0].mxu0
      %v1390 = vadd.f32 0.0, %v1389
      %v1391 = vpop.f32.mrb[0].mxu0
      %v1392 = vadd.f32 0.0, %v1391
      %v1393 = vpop.f32.mrb[0].mxu0
      %v1394 = vadd.f32 0.0, %v1393
      %v1395 = vpop.f32.mrb[0].mxu0
      %v1396 = vadd.f32 0.0, %v1395
      %1397 = vmatprep.mubr.bf16.mxu0 0
      %1398 = vmatmul.mubr.bf16.gmra.mrb[0].mxu0 %v1344
      %v1399 = vpop.f32.mrb[0].mxu0
      %v1400 = vadd.f32 0.0, %v1399
      %v1401 = vpop.f32.mrb[0].mxu0
      %v1402 = vadd.f32 0.0, %v1401
      %v1403 = vpop.f32.mrb[0].mxu0
      %v1404 = vadd.f32 0.0, %v1403
      %v1405 = vpop.f32.mrb[0].mxu0
      %v1406 = vadd.f32 0.0, %v1405
      %1407 = vdwg.mxu0
      %1408 = vmatprep.subr.bf16.mxu0 0
      %1409 = vmatpush1.bf16.msra.mxu0 %v1353
      %1410 = vmatprep.subr.bf16.mxu0 0
      %1411 = vmatpush1.bf16.msra.mxu0 0
      %1412 = vmatprep.subr.bf16.mxu0 0
      %1413 = vmatpush1.bf16.msra.mxu0 0
      %1414 = vmatprep.subr.bf16.mxu0 0
      %1415 = vmatpush1.bf16.msra.mxu0 0
      %1416 = vmatprep.subr.bf16.mxu0 0
      %1417 = vmatpush1.bf16.msra.mxu0 0
      %1418 = vmatprep.subr.bf16.mxu0 0
      %1419 = vmatpush1.bf16.msra.mxu0 0
      %1420 = vmatprep.subr.bf16.mxu0 0
      %1421 = vmatpush1.bf16.msra.mxu0 0
      %1422 = vmatprep.subr.bf16.mxu0 0
      %1423 = vmatpush1.bf16.msra.mxu0 0
      %1424 = vmatprep.subr.bf16.mxu0 0
      %1425 = vmatpush1.bf16.msra.mxu0 0
      %1426 = vmatprep.subr.bf16.mxu0 0
      %1427 = vmatpush1.bf16.msra.mxu0 0
      %1428 = vmatprep.subr.bf16.mxu0 0
      %1429 = vmatpush1.bf16.msra.mxu0 0
      %1430 = vmatprep.subr.bf16.mxu0 0
      %1431 = vmatpush1.bf16.msra.mxu0 0
      %1432 = vmatprep.subr.bf16.mxu0 0
      %1433 = vmatpush1.bf16.msra.mxu0 0
      %1434 = vmatprep.subr.bf16.mxu0 0
      %1435 = vmatpush1.bf16.msra.mxu0 0
      %1436 = vmatprep.subr.bf16.mxu0 0
      %1437 = vmatpush1.bf16.msra.mxu0 0
      %1438 = vmatprep.subr.bf16.mxu0 0
      %1439 = vmatpush1.bf16.msra.mxu0 0
      %1440 = vmatprep.mubr.bf16.mxu0 0
      %1441 = vmatmul.mubr.bf16.gmra.mrb[0].mxu0 %v1341
      %v1442 = vpop.f32.mrb[0].mxu0
      %v1443 = vadd.f32 0.0, %v1442
      %v1444 = vpop.f32.mrb[0].mxu0
      %v1445 = vpop.f32.mrb[0].mxu0
      %v1446 = vadd.f32 0.0, %v1445
      %v1447 = vpop.f32.mrb[0].mxu0
      %1448 = vmatprep.mubr.bf16.mxu0 0
      %1449 = vmatmul.mubr.bf16.gmra.mrb[0].mxu0 %v1344
      %v1450 = vpop.f32.mrb[0].mxu0
      %v1451 = vadd.f32 0.0, %v1450
      %v1452 = vpop.f32.mrb[0].mxu0
      %v1453 = vpop.f32.mrb[0].mxu0
      %v1454 = vadd.f32 0.0, %v1453
      %v1455 = vpop.f32.mrb[0].mxu0
      %1456 = vdwg.mxu0
      %v1457 = vadd.f32 %v1309, %v1390
      %v1458 = vadd.f32 %v1310, %v1392
      %v1459 = vadd.f32 %v1311, %v1443
      %v1460 = vadd.f32 %v1312, %v1394
      %v1461 = vadd.f32 %v1313, %v1396
      %v1462 = vadd.f32 %v1314, %v1446
      %v1463 = vadd.f32 %v1315, %v1400
      %v1464 = vadd.f32 %v1316, %v1402
      %v1465 = vadd.f32 %v1317, %v1451
      %v1466 = vadd.f32 %v1318, %v1404
      %v1467 = vadd.f32 %v1319, %v1406
      %v1468 = vadd.f32 %v1320, %v1454
      %v1473 = vunpack.c.l.b16 %v295
      %v1474 = vunpack.c.l.b16 %v296
      %v1475 = vunpack.c.l.b16 %v297
      %v1476 = vunpack.c.l.b16 %v298
      %v1477 = vpack.c.b16 %v1474, %v1473
      %v1478 = vpack.c.b16 %v1476, %v1475
      %1479 = vrot.lane.b32.xlu0 %v323, 90
      %v1480 = vpop.permute.xlu0 %1479
      %1481 = vrot.lane.b32.xlu0 %v324, 90
      %v1482 = vpop.permute.xlu0 %1481
      %1483 = vrot.lane.b32.xlu0 %v325, 90
      %v1484 = vpop.permute.xlu0 %1483
      %vm1485 = vcmask 736256
      %v1486 = vsel %vm1485, %v1480, %v1482
      %v1487 = vsel %vm1485, %v1482, %v1484
      %v1489 = vsel %vm335, %v1477, 0
      %v1492 = vsel %vm335, %v1478, 0
      %v1495 = vsel %vm342, %v1486, 0
      %v1498 = vsel %vm342, %v1487, 0
      %v1501 = vsel %vm342, %v1484, 0
      %1503 = vmatprep.subr.bf16.mxu0 %v1498
      %1504 = vmatpush1.bf16.msra.mxu0 %v1495
      %1505 = vmatprep.subr.bf16.mxu0 0
      %1506 = vmatpush1.bf16.msra.mxu0 0
      %1507 = vmatprep.subr.bf16.mxu0 0
      %1508 = vmatpush1.bf16.msra.mxu0 0
      %1509 = vmatprep.subr.bf16.mxu0 0
      %1510 = vmatpush1.bf16.msra.mxu0 0
      %1511 = vmatprep.subr.bf16.mxu0 0
      %1512 = vmatpush1.bf16.msra.mxu0 0
      %1513 = vmatprep.subr.bf16.mxu0 0
      %1514 = vmatpush1.bf16.msra.mxu0 0
      %1515 = vmatprep.subr.bf16.mxu0 0
      %1516 = vmatpush1.bf16.msra.mxu0 0
      %1517 = vmatprep.subr.bf16.mxu0 0
      %1518 = vmatpush1.bf16.msra.mxu0 0
      %1519 = vmatprep.subr.bf16.mxu0 0
      %1520 = vmatpush1.bf16.msra.mxu0 0
      %1521 = vmatprep.subr.bf16.mxu0 0
      %1522 = vmatpush1.bf16.msra.mxu0 0
      %1523 = vmatprep.subr.bf16.mxu0 0
      %1524 = vmatpush1.bf16.msra.mxu0 0
      %1525 = vmatprep.subr.bf16.mxu0 0
      %1526 = vmatpush1.bf16.msra.mxu0 0
      %1527 = vmatprep.subr.bf16.mxu0 0
      %1528 = vmatpush1.bf16.msra.mxu0 0
      %1529 = vmatprep.subr.bf16.mxu0 0
      %1530 = vmatpush1.bf16.msra.mxu0 0
      %1531 = vmatprep.subr.bf16.mxu0 0
      %1532 = vmatpush1.bf16.msra.mxu0 0
      %1533 = vmatprep.subr.bf16.mxu0 0
      %1534 = vmatpush1.bf16.msra.mxu0 0
      %1535 = vmatprep.mubr.bf16.mxu0 0
      %1536 = vmatmul.mubr.bf16.gmra.mrb[0].mxu0 %v1489
      %v1537 = vpop.f32.mrb[0].mxu0
      %v1538 = vadd.f32 0.0, %v1537
      %v1539 = vpop.f32.mrb[0].mxu0
      %v1540 = vadd.f32 0.0, %v1539
      %v1541 = vpop.f32.mrb[0].mxu0
      %v1542 = vadd.f32 0.0, %v1541
      %v1543 = vpop.f32.mrb[0].mxu0
      %v1544 = vadd.f32 0.0, %v1543
      %1545 = vmatprep.mubr.bf16.mxu0 0
      %1546 = vmatmul.mubr.bf16.gmra.mrb[0].mxu0 %v1492
      %v1547 = vpop.f32.mrb[0].mxu0
      %v1548 = vadd.f32 0.0, %v1547
      %v1549 = vpop.f32.mrb[0].mxu0
      %v1550 = vadd.f32 0.0, %v1549
      %v1551 = vpop.f32.mrb[0].mxu0
      %v1552 = vadd.f32 0.0, %v1551
      %v1553 = vpop.f32.mrb[0].mxu0
      %v1554 = vadd.f32 0.0, %v1553
      %1555 = vdwg.mxu0
      %1556 = vmatprep.subr.bf16.mxu0 0
      %1557 = vmatpush1.bf16.msra.mxu0 %v1501
      %1558 = vmatprep.subr.bf16.mxu0 0
      %1559 = vmatpush1.bf16.msra.mxu0 0
      %1560 = vmatprep.subr.bf16.mxu0 0
      %1561 = vmatpush1.bf16.msra.mxu0 0
      %1562 = vmatprep.subr.bf16.mxu0 0
      %1563 = vmatpush1.bf16.msra.mxu0 0
      %1564 = vmatprep.subr.bf16.mxu0 0
      %1565 = vmatpush1.bf16.msra.mxu0 0
      %1566 = vmatprep.subr.bf16.mxu0 0
      %1567 = vmatpush1.bf16.msra.mxu0 0
      %1568 = vmatprep.subr.bf16.mxu0 0
      %1569 = vmatpush1.bf16.msra.mxu0 0
      %1570 = vmatprep.subr.bf16.mxu0 0
      %1571 = vmatpush1.bf16.msra.mxu0 0
      %1572 = vmatprep.subr.bf16.mxu0 0
      %1573 = vmatpush1.bf16.msra.mxu0 0
      %1574 = vmatprep.subr.bf16.mxu0 0
      %1575 = vmatpush1.bf16.msra.mxu0 0
      %1576 = vmatprep.subr.bf16.mxu0 0
      %1577 = vmatpush1.bf16.msra.mxu0 0
      %1578 = vmatprep.subr.bf16.mxu0 0
      %1579 = vmatpush1.bf16.msra.mxu0 0
      %1580 = vmatprep.subr.bf16.mxu0 0
      %1581 = vmatpush1.bf16.msra.mxu0 0
      %1582 = vmatprep.subr.bf16.mxu0 0
      %1583 = vmatpush1.bf16.msra.mxu0 0
      %1584 = vmatprep.subr.bf16.mxu0 0
      %1585 = vmatpush1.bf16.msra.mxu0 0
      %1586 = vmatprep.subr.bf16.mxu0 0
      %1587 = vmatpush1.bf16.msra.mxu0 0
      %1588 = vmatprep.mubr.bf16.mxu0 0
      %1589 = vmatmul.mubr.bf16.gmra.mrb[0].mxu0 %v1489
      %v1590 = vpop.f32.mrb[0].mxu0
      %v1591 = vadd.f32 0.0, %v1590
      %v1592 = vpop.f32.mrb[0].mxu0
      %v1593 = vpop.f32.mrb[0].mxu0
      %v1594 = vadd.f32 0.0, %v1593
      %v1595 = vpop.f32.mrb[0].mxu0
      %1596 = vmatprep.mubr.bf16.mxu0 0
      %1597 = vmatmul.mubr.bf16.gmra.mrb[0].mxu0 %v1492
      %v1598 = vpop.f32.mrb[0].mxu0
      %v1599 = vadd.f32 0.0, %v1598
      %v1600 = vpop.f32.mrb[0].mxu0
      %v1601 = vpop.f32.mrb[0].mxu0
      %v1602 = vadd.f32 0.0, %v1601
      %v1603 = vpop.f32.mrb[0].mxu0
      %1604 = vdwg.mxu0
      %v1605 = vadd.f32 %v1457, %v1538
      %v1606 = vadd.f32 %v1458, %v1540
      %v1607 = vadd.f32 %v1459, %v1591
      %v1608 = vadd.f32 %v1460, %v1542
      %v1609 = vadd.f32 %v1461, %v1544
      %v1610 = vadd.f32 %v1462, %v1594
      %v1611 = vadd.f32 %v1463, %v1548
      %v1612 = vadd.f32 %v1464, %v1550
      %v1613 = vadd.f32 %v1465, %v1599
      %v1614 = vadd.f32 %v1466, %v1552
      %v1615 = vadd.f32 %v1467, %v1554
      %v1616 = vadd.f32 %v1468, %v1602
      %1618 = vset.pattern.permute.xlu0 0
      %1619 = vperm.xlu0 %1618, %v259
      %v1620 = vpop.permute.xlu0 %1619
      %1623 = vset.pattern.permute.xlu0 0
      %1624 = vperm.xlu0 %1623, %v260
      %v1625 = vpop.permute.xlu0 %1624
      %1628 = vset.pattern.permute.xlu0 0
      %1629 = vperm.xlu0 %1628, %v261
      %v1630 = vpop.permute.xlu0 %1629
      %1633 = vset.pattern.permute.xlu0 0
      %1634 = vperm.xlu0 %1633, %v262
      %v1635 = vpop.permute.xlu0 %1634
      %v1637 = vadd.f32 %v1605, %v1620
      %v1638 = vadd.f32 %v1606, %v1620
      %v1639 = vadd.f32 %v1607, %v1620
      %v1640 = vadd.f32 %v1608, %v1625
      %v1641 = vadd.f32 %v1609, %v1625
      %v1642 = vadd.f32 %v1610, %v1625
      %v1643 = vadd.f32 %v1611, %v1630
      %v1644 = vadd.f32 %v1612, %v1630
      %v1645 = vadd.f32 %v1613, %v1630
      %v1646 = vadd.f32 %v1614, %v1635
      %v1647 = vadd.f32 %v1615, %v1635
      %v1648 = vadd.f32 %v1616, %v1635
      %v1649 = vxor.u32 %v1637, 2147483648
      %v1650 = vxor.u32 %v1638, 2147483648
      %v1651 = vxor.u32 %v1639, 2147483648
      %v1652 = vxor.u32 %v1640, 2147483648
      %v1653 = vxor.u32 %v1641, 2147483648
      %v1654 = vxor.u32 %v1642, 2147483648
      %v1655 = vxor.u32 %v1643, 2147483648
      %v1656 = vxor.u32 %v1644, 2147483648
      %v1657 = vxor.u32 %v1645, 2147483648
      %v1658 = vmul.f32 %v1649, 1.442695
      %v1659 = vpow.pop %v1658
      %v1660 = vmul.f32 %v1650, 1.442695
      %v1661 = vpow.pop %v1660
      %v1662 = vmul.f32 %v1651, 1.442695
      %v1663 = vpow.pop %v1662
      %v1664 = vmul.f32 %v1652, 1.442695
      %v1665 = vpow.pop %v1664
      %v1666 = vmul.f32 %v1653, 1.442695
      %v1667 = vpow.pop %v1666
      %v1668 = vmul.f32 %v1654, 1.442695
      %v1669 = vpow.pop %v1668
      %v1670 = vmul.f32 %v1655, 1.442695
      %v1671 = vpow.pop %v1670
      %v1672 = vmul.f32 %v1656, 1.442695
      %v1673 = vpow.pop %v1672
      %v1674 = vmul.f32 %v1657, 1.442695
      %v1675 = vpow.pop %v1674
      %v1676 = vadd.f32 %v1659, 1.0
      %v1677 = vadd.f32 %v1661, 1.0
      %v1678 = vadd.f32 %v1663, 1.0
      %v1679 = vadd.f32 %v1665, 1.0
      %v1680 = vadd.f32 %v1667, 1.0
      %v1681 = vadd.f32 %v1669, 1.0
      %v1682 = vadd.f32 %v1671, 1.0
      %v1683 = vadd.f32 %v1673, 1.0
      %v1684 = vadd.f32 %v1675, 1.0
      %v1685 = vrcp.pop %v1676
      %v1686 = vmul.f32 1.0, %v1685
      %v1687 = vrcp.pop %v1677
      %v1688 = vmul.f32 1.0, %v1687
      %v1689 = vrcp.pop %v1678
      %v1690 = vmul.f32 1.0, %v1689
      %v1691 = vrcp.pop %v1679
      %v1692 = vmul.f32 1.0, %v1691
      %v1693 = vrcp.pop %v1680
      %v1694 = vmul.f32 1.0, %v1693
      %v1695 = vrcp.pop %v1681
      %v1696 = vmul.f32 1.0, %v1695
      %v1697 = vrcp.pop %v1682
      %v1698 = vmul.f32 1.0, %v1697
      %v1699 = vrcp.pop %v1683
      %v1700 = vmul.f32 1.0, %v1699
      %v1701 = vrcp.pop %v1684
      %v1702 = vmul.f32 1.0, %v1701
      %v1703 = vtanh.pop %v1646
      %v1704 = vtanh.pop %v1647
      %v1705 = vtanh.pop %v1648
      %v1706 = vld [vmem:[%s247] sm:$0xff]
      %v1707 = vld [vmem:[%s247 + $0x8] sm:$0xff]
      %v1708 = vld [vmem:[%s247 + $0x10] sm:$0xff]
      %v1709 = vmul.f32 %v1692, %v1706
      %v1710 = vmul.f32 %v1694, %v1707
      %v1711 = vmul.f32 %v1696, %v1708
      %v1712 = vmul.f32 %v1686, %v1703
      %v1713 = vmul.f32 %v1688, %v1704
      %v1714 = vmul.f32 %v1690, %v1705
      %v1715 = vadd.f32 %v1709, %v1712
      %v1716 = vadd.f32 %v1710, %v1713
      %v1717 = vadd.f32 %v1711, %v1714
      %v1718 = vtanh.pop %v1715
      %v1719 = vtanh.pop %v1716
      %v1720 = vtanh.pop %v1717
      %v1721 = vmul.f32 %v1698, %v1718
      %v1722 = vmul.f32 %v1700, %v1719
      %v1723 = vmul.f32 %v1702, %v1720
      %1724 = vst [vmem:[%s252] sm:$0xff] %v1721
      %1725 = vst [vmem:[%s252 + $0x8] sm:$0xff] %v1722
      %vm1726 = vcmask 261120
      %1727 = vst.msk [vmem:[%s252 + $0x10] sm:$0xff] %vm1726, %v1723
      %1728 = vst [vmem:[%s257] sm:$0xff] %v1715
      %1729 = vst [vmem:[%s257 + $0x8] sm:$0xff] %v1716
      %1730 = vst.msk [vmem:[%s257 + $0x10] sm:$0xff] %vm1726, %v1717
      %p1731 = scmp.lt.s32.totalorder %s17, 1
      %s1732 = scalar_select %p1731, %s17, 1
      %s1733 = smul.addr %s1732, 3
      %s1734 = smul.addr %s1733, 8
      %s1735 = scalar_lea.vmem %s4, %s1734
      %p1736 = scmp.lt.s32.totalorder %s17, 1
      %s1737 = scalar_select %p1736, %s17, 1
      %s1738 = smul.addr %s1737, 3
      %s1739 = smul.addr %s1738, 8
      %s1740 = scalar_lea.vmem %s5, %s1739
      // Predicated region
      $region37: #{clstm_cell.1} parent=35 // pred_check
        %p1741 = pneg %p129
      $region38: #{clstm_cell.1} parent=35 // pred_check_branch
        %1743 = sbr.rel (%p1741) target = $region40
      $region39: #{clstm_cell.1} parent=35 // pred_region
        _
      $region40: #{clstm_cell.1} parent=35 // pred_fallthru
        _
      // Predicated region
      $region41: #{clstm_cell.1} parent=35 // pred_check
        %p1744 = pneg %p155
      $region42: #{clstm_cell.1} parent=35 // pred_check_branch
        %1746 = sbr.rel (%p1744) target = $region44
      $region43: #{clstm_cell.1} parent=35 // pred_region
        _
      $region44: #{clstm_cell.1} parent=35 // pred_fallthru
        _
    $region36: #{clstm_cell.1} parent=5 // pred_fallthru
      _
    %p1747 = scmp.le.s32.totalorder 2, %s12
    // Predicated region
    $region45: #{clstm_cell.1} parent=5 // pred_check
      %p1748 = pneg %p1747
    $region46: #{clstm_cell.1} parent=5 // pred_check_branch
      %1750 = sbr.rel (%p1748) target = $region48
    $region47: #{clstm_cell.1} parent=5 // pred_region
      %s1751 = ssub.s32 %s12, 2
      // Predicated region
      $region49: #{clstm_cell.1} parent=47 // pred_check
        %p1752 = pneg %p135
      $region50: #{clstm_cell.1} parent=47 // pred_check_branch
        %1754 = sbr.rel (%p1752) target = $region52
      $region51: #{clstm_cell.1} parent=47 // pred_region
        %p1755 = scmp.lt.s32.totalorder %s18, 1
        %s1756 = scalar_select %p1755, %s18, 1
        %s1757 = smul.addr %s1756, 3
        %s1758 = smul.addr %s1757, 8
        %s1759 = scalar_lea.vmem %s4, %s1758
      $region52: #{clstm_cell.1} parent=47 // pred_fallthru
        _
      // Predicated region
      $region53: #{clstm_cell.1} parent=47 // pred_check
        %p1760 = pneg %p161
      $region54: #{clstm_cell.1} parent=47 // pred_check_branch
        %1762 = sbr.rel (%p1760) target = $region56
      $region55: #{clstm_cell.1} parent=47 // pred_region
        %p1763 = scmp.lt.s32.totalorder %s18, 1
        %s1764 = scalar_select %p1763, %s18, 1
        %s1765 = smul.addr %s1764, 3
        %s1766 = smul.addr %s1765, 8
        %s1767 = scalar_lea.vmem %s5, %s1766
      $region56: #{clstm_cell.1} parent=47 // pred_fallthru
        _
    $region48: #{clstm_cell.1} parent=5 // pred_fallthru
      _
  $region6: #{clstm_cell.1} parent=0 // loop_footer
    %s16 = sadd.s32 1, %s12
  $region7: #{clstm_cell.1} parent=0 // loop_footer_branch
    %11 = sbr.rel target = $region3
  $region8: #{clstm_cell.1} parent=0 // loop_exit
    _

</llo_original>
